<compile_context>
chip_gen: v5e
topology: v5e:2x2
jax: 0.10.0
libtpu: 0.0.40
codegen_flags: <defaults>
</compile_context>

<pallas_src>
import functools

import jax
import jax.numpy as jnp
from jax.experimental import pallas as pl
from jax.experimental.pallas import tpu as pltpu


def _conditioned_param_fused_kernel(scale_ref, x_ref, w1_ref, b1_ref, w2_ref,
                                    b2_ref, grad_ref, out_ref, *, n, p0, p1):
    # scale_ref: [1, 1]      SMEM   runtime max_scale
    # x_ref:     [1, C]      VMEM   shared condition vector
    # w1_ref:    [C, N*H]    VMEM   fused layer-1 weight (instance-major cols)
    # b1_ref:    [1, N*H]    VMEM
    # w2_ref:    [N*H, OC]   VMEM   block-diagonal layer-2 weight, columns
    #                               regrouped [cola | rowa | colb | rowb | norm]
    # b2_ref:    [1, OC]     VMEM
    # grad_ref:  [N, P0, P1] VMEM
    # out_ref:   [N, P0, P1] VMEM
    x = x_ref[...]

    # Layer 1 for all N instances: one [1,C] @ [C,N*H] MXU op, lane-dense out.
    h = jnp.tanh(jnp.dot(x, w1_ref[...], preferred_element_type=jnp.float32)
                 + b1_ref[...])                                    # [1, N*H]

    # Layer 2 for all N instances: one [1,N*H] @ [N*H,OC] MXU op on the
    # block-diagonal weight (zero-block FLOPs are free at this scale).
    c = (jnp.dot(h, w2_ref[...], preferred_element_type=jnp.float32)
         + b2_ref[...])                                            # [1, OC]

    o_rowa = n * p1
    o_colb = o_rowa + n * p0
    o_rowb = o_colb + n * p1
    o_norm = o_rowb + n * p0

    max_scale = scale_ref[0, 0]
    # One EUP pass for all N sigmoid gates; kept as a [1, N] vector.
    sig = jax.nn.sigmoid(c[:, o_norm:o_norm + n])                  # [1, N]

    def _softmax_col(z):
        # Exact softmax over lanes, returned as a column [k, 1] (XLU transpose).
        m = jnp.max(z, axis=-1, keepdims=True)
        e = jnp.exp(z - m)
        return (e / jnp.sum(e, axis=-1, keepdims=True)).T

    # Per-instance tail: B == 1 makes softmax(row).T @ col rank-1, so it is a
    # VPU broadcast multiply (no K=1 MXU matmuls).  N is small & static, so the
    # loop unrolls inside the single invocation; every slice offset is a static
    # multiple of P0 / P1.  (Batching this tail as [N, P0] row ops would need a
    # lane->sublane reshape of the matmul output; it is ~one vreg of work either
    # way, so the reshape is not worth the lowering risk.)
    for i in range(n):
        cola = c[:, i * p1:(i + 1) * p1]                           # [1, P1]
        rowa = c[:, o_rowa + i * p0:o_rowa + (i + 1) * p0]         # [1, P0]
        colb = c[:, o_colb + i * p1:o_colb + (i + 1) * p1]         # [1, P1]
        rowb = c[:, o_rowb + i * p0:o_rowb + (i + 1) * p0]         # [1, P0]
        a = _softmax_col(rowa) * cola                              # [P0, P1]
        b = _softmax_col(rowb) * colb                              # [P0, P1]
        scale = max_scale * sig[:, i:i + 1]                        # [1, 1]
        out_ref[i] = (scale * (grad_ref[i] * a + b)).astype(out_ref.dtype)


def _block_diag(blocks):
    k = len(blocks)
    r, c = blocks[0].shape
    out = jnp.zeros((k * r, k * c), blocks[0].dtype)
    for i, blk in enumerate(blocks):
        out = out.at[i * r:(i + 1) * r, i * c:(i + 1) * c].set(blk)
    return out


def prepare_conditioned_parameters(stacked_params, parameter_shape):
    """One-time parameter prep (hoisted out of the forward path).

    stacked_params: (w1 [N,C,H], b1 [N,1,H], w2 [N,H,O], b2 [N,1,O]) with
    weight_norm already resolved to effective dense weights.
    Returns (w1_all [C,N*H], b1_all [1,N*H], w2_bd [N*H,OC], b2_all [1,OC]).
    """
    w1, b1, w2, b2 = stacked_params
    p0, p1 = parameter_shape
    n, c_dim, hidden = w1.shape
    assert w2.shape[-1] == 2 * (p0 + p1) + 1

    # Layer 1: shared condition vector -> fuse N matmuls into one.  Columns are
    # instance-major so instance i's hidden block is h[:, i*H:(i+1)*H].
    w1_all = jnp.transpose(w1, (1, 0, 2)).reshape(c_dim, n * hidden)
    b1_all = jnp.transpose(b1, (1, 0, 2)).reshape(1, n * hidden)

    # Layer 2: block-diagonal fuse.  Output columns regrouped by section type
    # (cola | rowa | colb | rowb | norm), instance-major within each section,
    # so in-kernel per-instance slice offsets are static multiples of P0/P1.
    sections = [(0, p1), (p1, p1 + p0), (p1 + p0, 2 * p1 + p0),
                (2 * p1 + p0, 2 * (p1 + p0)),
                (2 * (p1 + p0), 2 * (p1 + p0) + 1)]
    w2_cols, b2_cols = [], []
    for s0, s1 in sections:
        w2_cols.append(_block_diag([w2[i, :, s0:s1] for i in range(n)]))
        b2_cols.append(b2[:, 0, s0:s1].reshape(1, n * (s1 - s0)))
    w2_bd = jnp.concatenate(w2_cols, axis=1)
    b2_all = jnp.concatenate(b2_cols, axis=1)
    return w1_all, b1_all, w2_bd, b2_all


def conditioned_parameter_forward_batched(inputs, grads, prepared, max_scale=1.0):
    """Run N ConditionedParameter instances in one un-gridded pallas_call.

    inputs:   [1, condition_dim]   single condition vector shared by all.
    grads:    [N, P0, P1]
    prepared: output of prepare_conditioned_parameters().
    returns:  [N, P0, P1]
    """
    if inputs.ndim != 2 or inputs.shape[0] != 1:
        raise ValueError("this kernel models the B == 1 forward path; got "
                         f"inputs of shape {inputs.shape}")
    w1_all, b1_all, w2_bd, b2_all = prepared
    n, p0, p1 = grads.shape

    kernel = functools.partial(_conditioned_param_fused_kernel,
                               n=n, p0=p0, p1=p1)
    scale_arr = jnp.full((1, 1), max_scale, jnp.float32)   # SMEM scalar, not baked in

    vmem = pl.BlockSpec(memory_space=pltpu.MemorySpace.VMEM)
    smem = pl.BlockSpec(memory_space=pltpu.MemorySpace.SMEM)

    return pl.pallas_call(
        kernel,
        out_shape=jax.ShapeDtypeStruct((n, p0, p1), jnp.float32),
        in_specs=[smem, vmem, vmem, vmem, vmem, vmem, vmem],
        out_specs=vmem,
    )(scale_arr, inputs, w1_all, b1_all, w2_bd, b2_all, grads)


def conditioned_parameter_forward(inputs, grad, params, max_scale=1.0):
    """Single-instance wrapper (matches the PyTorch module's call signature)."""
    w1, b1, w2, b2 = params
    prepared = prepare_conditioned_parameters(
        (w1[None], b1[None], w2[None], b2[None]), grad.shape)
    out = conditioned_parameter_forward_batched(inputs, grad[None], prepared,
                                                max_scale=max_scale)
    return out[0]


def make_weight_norm_linear(key, in_dim, out_dim):
    """Deterministic weight-normed Linear -> effective (W [in,out], b [1,out])."""
    kv, kg, kb = jax.random.split(key, 3)
    v = jax.random.normal(kv, (out_dim, in_dim), jnp.float32) * 0.05
    g = 1.0 + 0.1 * jax.random.normal(kg, (out_dim,), jnp.float32)
    bias = 0.05 * jax.random.normal(kb, (out_dim,), jnp.float32)
    # PyTorch weight_norm (dim=0 for Linear): w[o, :] = g[o] * v[o, :] / ||v[o, :]||
    w = g[:, None] * v / jnp.linalg.norm(v, axis=1, keepdims=True)
    return w.T, bias[None, :]


def reference_forward(inputs, grad, params, max_scale=1.0):
    w1, b1, w2, b2 = params
    p0, p1 = grad.shape
    h = jnp.tanh(inputs @ w1 + b1)
    c = h @ w2 + b2
    cola, rowa, colb, rowb, norm = jnp.split(
        c, [p1, p1 + p0, 2 * p1 + p0, 2 * (p1 + p0)], axis=-1)
    a = jax.nn.softmax(rowa, axis=-1).T @ cola
    b = jax.nn.softmax(rowb, axis=-1).T @ colb
    return max_scale * jax.nn.sigmoid(norm).squeeze() * (grad * a + b)


if __name__ == "__main__":
    CONDITION_DIM, HIDDEN_DIM = 64, 32
    P0, P1 = 16, 8            # 2-D parameter shape
    N_PARAMS = 8              # ConditionedParameter instances fused into one call
    B = 1                     # single condition vector (what the forward implies)
    MAX_SCALE = 1.0

    key = jax.random.PRNGKey(0)
    kx, kg, kp = jax.random.split(key, 3)
    inputs = jax.random.normal(kx, (B, CONDITION_DIM), jnp.float32)
    grads = jax.random.normal(kg, (N_PARAMS, P0, P1), jnp.float32)

    w1s, b1s, w2s, b2s = [], [], [], []
    for pk in jax.random.split(kp, N_PARAMS):
        k1, k2 = jax.random.split(pk)
        w1, b1 = make_weight_norm_linear(k1, CONDITION_DIM, HIDDEN_DIM)
        w2, b2 = make_weight_norm_linear(k2, HIDDEN_DIM, 2 * (P0 + P1) + 1)
        w1s.append(w1); b1s.append(b1); w2s.append(w2); b2s.append(b2)
    stacked = (jnp.stack(w1s), jnp.stack(b1s), jnp.stack(w2s), jnp.stack(b2s))

    # One-time parameter prep (layer-1 fusion + layer-2 block-diag), hoisted
    # out of the forward path.
    prepared = prepare_conditioned_parameters(stacked, (P0, P1))

    # Single fused kernel invocation over all parameter instances.
    out = conditioned_parameter_forward_batched(inputs, grads, prepared,
                                                max_scale=MAX_SCALE)
    out = jax.block_until_ready(out)
    assert out.shape == (N_PARAMS, P0, P1)

    ref = jnp.stack([
        reference_forward(
            inputs, grads[i],
            (stacked[0][i], stacked[1][i], stacked[2][i], stacked[3][i]),
            MAX_SCALE)
        for i in range(N_PARAMS)])
    assert jnp.allclose(out, ref, atol=5e-4, rtol=5e-4), "batched mismatch vs reference"

    # Single-instance path (the PyTorch module's per-parameter forward).
    out0 = conditioned_parameter_forward(
        inputs, grads[0],
        (stacked[0][0], stacked[1][0], stacked[2][0], stacked[3][0]),
        max_scale=MAX_SCALE)
    out0 = jax.block_until_ready(out0)
    assert jnp.allclose(out0, ref[0], atol=5e-4, rtol=5e-4), "single mismatch vs reference"

    print("KERNEL_OK")
</pallas_src>

<mosaic_0001>
module attributes {stable_mosaic.version = 11 : i64} {
  func.func @_conditioned_param_fused_kernel(%arg0: memref<1x1xf32, #tpu.memory_space<smem>>, %arg1: memref<1x64xf32, #tpu.memory_space<vmem>>, %arg2: memref<64x256xf32, #tpu.memory_space<vmem>>, %arg3: memref<1x256xf32, #tpu.memory_space<vmem>>, %arg4: memref<256x392xf32, #tpu.memory_space<vmem>>, %arg5: memref<1x392xf32, #tpu.memory_space<vmem>>, %arg6: memref<8x16x8xf32, #tpu.memory_space<vmem>>, %arg7: memref<8x16x8xf32, #tpu.memory_space<vmem>>) attributes {dimension_semantics = [], scalar_prefetch = 0 : i64, scratch_operands = 0 : i64, tpu.core_type = #tpu.core_type<tc>} {
    %c0 = arith.constant 0 : index
    %c0_0 = arith.constant 0 : index
    %0 = vector.load %arg1[%c0, %c0_0] : memref<1x64xf32, #tpu.memory_space<vmem>>, vector<1x64xf32>
    %c0_1 = arith.constant 0 : index
    %c0_2 = arith.constant 0 : index
    %1 = vector.load %arg2[%c0_1, %c0_2] : memref<64x256xf32, #tpu.memory_space<vmem>>, vector<64x256xf32>
    %cst = arith.constant dense<0.000000e+00> : vector<1x256xf32>
    %2 = tpu.matmul %0, %1, %cst {dimension_numbers = #tpu.dot_dimension_numbers<[1], [0], [0], [1], [0, 0, 1, 1], [], []>} : vector<1x64xf32>, vector<64x256xf32>, vector<1x256xf32> -> vector<1x256xf32>
    %c0_3 = arith.constant 0 : index
    %c0_4 = arith.constant 0 : index
    %3 = vector.load %arg3[%c0_3, %c0_4] : memref<1x256xf32, #tpu.memory_space<vmem>>, vector<1x256xf32>
    %4 = arith.addf %2, %3 : vector<1x256xf32>
    %5 = math.tanh %4 : vector<1x256xf32>
    %c0_5 = arith.constant 0 : index
    %c0_6 = arith.constant 0 : index
    %6 = vector.load %arg4[%c0_5, %c0_6] : memref<256x392xf32, #tpu.memory_space<vmem>>, vector<256x392xf32>
    %cst_7 = arith.constant dense<0.000000e+00> : vector<1x392xf32>
    %7 = tpu.matmul %5, %6, %cst_7 {dimension_numbers = #tpu.dot_dimension_numbers<[1], [0], [0], [1], [0, 0, 1, 1], [], []>} : vector<1x256xf32>, vector<256x392xf32>, vector<1x392xf32> -> vector<1x392xf32>
    %c0_8 = arith.constant 0 : index
    %c0_9 = arith.constant 0 : index
    %8 = vector.load %arg5[%c0_8, %c0_9] : memref<1x392xf32, #tpu.memory_space<vmem>>, vector<1x392xf32>
    %9 = arith.addf %7, %8 : vector<1x392xf32>
    %c0_10 = arith.constant 0 : index
    %c0_11 = arith.constant 0 : index
    %10 = memref.load %arg0[%c0_10, %c0_11] : memref<1x1xf32, #tpu.memory_space<smem>>
    %11 = vector.extract_strided_slice %9 {offsets = [0, 384], sizes = [1, 8], strides = [1, 1]} : vector<1x392xf32> to vector<1x8xf32>
    %12 = arith.negf %11 : vector<1x8xf32>
    %13 = math.exp %12 : vector<1x8xf32>
    %cst_12 = arith.constant 1.000000e+00 : f32
    %14 = vector.broadcast %cst_12 : f32 to vector<1x8xf32>
    %15 = arith.addf %14, %13 : vector<1x8xf32>
    %16 = arith.divf %14, %15 : vector<1x8xf32>
    %17 = vector.extract_strided_slice %9 {offsets = [0, 0], sizes = [1, 8], strides = [1, 1]} : vector<1x392xf32> to vector<1x8xf32>
    %18 = vector.extract_strided_slice %9 {offsets = [0, 64], sizes = [1, 16], strides = [1, 1]} : vector<1x392xf32> to vector<1x16xf32>
    %19 = vector.extract_strided_slice %9 {offsets = [0, 192], sizes = [1, 8], strides = [1, 1]} : vector<1x392xf32> to vector<1x8xf32>
    %20 = vector.extract_strided_slice %9 {offsets = [0, 256], sizes = [1, 16], strides = [1, 1]} : vector<1x392xf32> to vector<1x16xf32>
    %cst_13 = arith.constant dense<0xFF800000> : vector<1xf32>
    %21 = vector.multi_reduction <maximumf>, %18, %cst_13 [1] : vector<1x16xf32> to vector<1xf32>
    %22 = vector.shape_cast %21 : vector<1xf32> to vector<1x1xf32>
    %23 = vector.broadcast %22 : vector<1x1xf32> to vector<1x16xf32>
    %24 = arith.subf %18, %23 : vector<1x16xf32>
    %25 = math.exp %24 : vector<1x16xf32>
    %cst_14 = arith.constant dense<0.000000e+00> : vector<1xf32>
    %26 = vector.multi_reduction <add>, %25, %cst_14 [1] : vector<1x16xf32> to vector<1xf32>
    %27 = vector.shape_cast %26 : vector<1xf32> to vector<1x1xf32>
    %28 = vector.broadcast %27 : vector<1x1xf32> to vector<1x16xf32>
    %29 = arith.divf %25, %28 : vector<1x16xf32>
    %30 = tpu.transpose %29, [1, 0] : vector<1x16xf32> -> vector<16x1xf32>
    %31 = vector.broadcast %30 : vector<16x1xf32> to vector<16x8xf32>
    %32 = vector.broadcast %17 : vector<1x8xf32> to vector<16x8xf32>
    %33 = arith.mulf %31, %32 : vector<16x8xf32>
    %cst_15 = arith.constant dense<0xFF800000> : vector<1xf32>
    %34 = vector.multi_reduction <maximumf>, %20, %cst_15 [1] : vector<1x16xf32> to vector<1xf32>
    %35 = vector.shape_cast %34 : vector<1xf32> to vector<1x1xf32>
    %36 = vector.broadcast %35 : vector<1x1xf32> to vector<1x16xf32>
    %37 = arith.subf %20, %36 : vector<1x16xf32>
    %38 = math.exp %37 : vector<1x16xf32>
    %cst_16 = arith.constant dense<0.000000e+00> : vector<1xf32>
    %39 = vector.multi_reduction <add>, %38, %cst_16 [1] : vector<1x16xf32> to vector<1xf32>
    %40 = vector.shape_cast %39 : vector<1xf32> to vector<1x1xf32>
    %41 = vector.broadcast %40 : vector<1x1xf32> to vector<1x16xf32>
    %42 = arith.divf %38, %41 : vector<1x16xf32>
    %43 = tpu.transpose %42, [1, 0] : vector<1x16xf32> -> vector<16x1xf32>
    %44 = vector.broadcast %43 : vector<16x1xf32> to vector<16x8xf32>
    %45 = vector.broadcast %19 : vector<1x8xf32> to vector<16x8xf32>
    %46 = arith.mulf %44, %45 : vector<16x8xf32>
    %47 = vector.extract_strided_slice %16 {offsets = [0, 0], sizes = [1, 1], strides = [1, 1]} : vector<1x8xf32> to vector<1x1xf32>
    %48 = vector.broadcast %10 : f32 to vector<1x1xf32>
    %49 = arith.mulf %48, %47 : vector<1x1xf32>
    %c0_17 = arith.constant 0 : index
    %c0_18 = arith.constant 0 : index
    %c0_19 = arith.constant 0 : index
    %50 = vector.load %arg6[%c0_17, %c0_18, %c0_19] : memref<8x16x8xf32, #tpu.memory_space<vmem>>, vector<1x16x8xf32>
    %51 = vector.shape_cast %50 : vector<1x16x8xf32> to vector<16x8xf32>
    %52 = arith.mulf %51, %33 : vector<16x8xf32>
    %53 = arith.addf %52, %46 : vector<16x8xf32>
    %54 = vector.broadcast %49 : vector<1x1xf32> to vector<16x8xf32>
    %55 = arith.mulf %54, %53 : vector<16x8xf32>
    %c0_20 = arith.constant 0 : index
    %c0_21 = arith.constant 0 : index
    %c0_22 = arith.constant 0 : index
    %56 = vector.load %arg7[%c0_20, %c0_21, %c0_22] : memref<8x16x8xf32, #tpu.memory_space<vmem>>, vector<1x16x8xf32>
    %57 = vector.shape_cast %56 : vector<1x16x8xf32> to vector<16x8xf32>
    %58 = vector.shape_cast %55 : vector<16x8xf32> to vector<1x16x8xf32>
    tpu.vector_store %arg7[%c0_20, %c0_21, %c0_22], %58 {strides = array<i32>} : memref<8x16x8xf32, #tpu.memory_space<vmem>>, vector<1x16x8xf32>,
    %59 = vector.extract_strided_slice %9 {offsets = [0, 8], sizes = [1, 8], strides = [1, 1]} : vector<1x392xf32> to vector<1x8xf32>
    %60 = vector.extract_strided_slice %9 {offsets = [0, 80], sizes = [1, 16], strides = [1, 1]} : vector<1x392xf32> to vector<1x16xf32>
    %61 = vector.extract_strided_slice %9 {offsets = [0, 200], sizes = [1, 8], strides = [1, 1]} : vector<1x392xf32> to vector<1x8xf32>
    %62 = vector.extract_strided_slice %9 {offsets = [0, 272], sizes = [1, 16], strides = [1, 1]} : vector<1x392xf32> to vector<1x16xf32>
    %cst_23 = arith.constant dense<0xFF800000> : vector<1xf32>
    %63 = vector.multi_reduction <maximumf>, %60, %cst_23 [1] : vector<1x16xf32> to vector<1xf32>
    %64 = vector.shape_cast %63 : vector<1xf32> to vector<1x1xf32>
    %65 = vector.broadcast %64 : vector<1x1xf32> to vector<1x16xf32>
    %66 = arith.subf %60, %65 : vector<1x16xf32>
    %67 = math.exp %66 : vector<1x16xf32>
    %cst_24 = arith.constant dense<0.000000e+00> : vector<1xf32>
    %68 = vector.multi_reduction <add>, %67, %cst_24 [1] : vector<1x16xf32> to vector<1xf32>
    %69 = vector.shape_cast %68 : vector<1xf32> to vector<1x1xf32>
    %70 = vector.broadcast %69 : vector<1x1xf32> to vector<1x16xf32>
    %71 = arith.divf %67, %70 : vector<1x16xf32>
    %72 = tpu.transpose %71, [1, 0] : vector<1x16xf32> -> vector<16x1xf32>
    %73 = vector.broadcast %72 : vector<16x1xf32> to vector<16x8xf32>
    %74 = vector.broadcast %59 : vector<1x8xf32> to vector<16x8xf32>
    %75 = arith.mulf %73, %74 : vector<16x8xf32>
    %cst_25 = arith.constant dense<0xFF800000> : vector<1xf32>
    %76 = vector.multi_reduction <maximumf>, %62, %cst_25 [1] : vector<1x16xf32> to vector<1xf32>
    %77 = vector.shape_cast %76 : vector<1xf32> to vector<1x1xf32>
    %78 = vector.broadcast %77 : vector<1x1xf32> to vector<1x16xf32>
    %79 = arith.subf %62, %78 : vector<1x16xf32>
    %80 = math.exp %79 : vector<1x16xf32>
    %cst_26 = arith.constant dense<0.000000e+00> : vector<1xf32>
    %81 = vector.multi_reduction <add>, %80, %cst_26 [1] : vector<1x16xf32> to vector<1xf32>
    %82 = vector.shape_cast %81 : vector<1xf32> to vector<1x1xf32>
    %83 = vector.broadcast %82 : vector<1x1xf32> to vector<1x16xf32>
    %84 = arith.divf %80, %83 : vector<1x16xf32>
    %85 = tpu.transpose %84, [1, 0] : vector<1x16xf32> -> vector<16x1xf32>
    %86 = vector.broadcast %85 : vector<16x1xf32> to vector<16x8xf32>
    %87 = vector.broadcast %61 : vector<1x8xf32> to vector<16x8xf32>
    %88 = arith.mulf %86, %87 : vector<16x8xf32>
    %89 = vector.extract_strided_slice %16 {offsets = [0, 1], sizes = [1, 1], strides = [1, 1]} : vector<1x8xf32> to vector<1x1xf32>
    %90 = vector.broadcast %10 : f32 to vector<1x1xf32>
    %91 = arith.mulf %90, %89 : vector<1x1xf32>
    %c1 = arith.constant 1 : index
    %c0_27 = arith.constant 0 : index
    %c0_28 = arith.constant 0 : index
    %92 = vector.load %arg6[%c1, %c0_27, %c0_28] : memref<8x16x8xf32, #tpu.memory_space<vmem>>, vector<1x16x8xf32>
    %93 = vector.shape_cast %92 : vector<1x16x8xf32> to vector<16x8xf32>
    %94 = arith.mulf %93, %75 : vector<16x8xf32>
    %95 = arith.addf %94, %88 : vector<16x8xf32>
    %96 = vector.broadcast %91 : vector<1x1xf32> to vector<16x8xf32>
    %97 = arith.mulf %96, %95 : vector<16x8xf32>
    %c1_29 = arith.constant 1 : index
    %c0_30 = arith.constant 0 : index
    %c0_31 = arith.constant 0 : index
    %98 = vector.load %arg7[%c1_29, %c0_30, %c0_31] : memref<8x16x8xf32, #tpu.memory_space<vmem>>, vector<1x16x8xf32>
    %99 = vector.shape_cast %98 : vector<1x16x8xf32> to vector<16x8xf32>
    %100 = vector.shape_cast %97 : vector<16x8xf32> to vector<1x16x8xf32>
    tpu.vector_store %arg7[%c1_29, %c0_30, %c0_31], %100 {strides = array<i32>} : memref<8x16x8xf32, #tpu.memory_space<vmem>>, vector<1x16x8xf32>,
    %101 = vector.extract_strided_slice %9 {offsets = [0, 16], sizes = [1, 8], strides = [1, 1]} : vector<1x392xf32> to vector<1x8xf32>
    %102 = vector.extract_strided_slice %9 {offsets = [0, 96], sizes = [1, 16], strides = [1, 1]} : vector<1x392xf32> to vector<1x16xf32>
    %103 = vector.extract_strided_slice %9 {offsets = [0, 208], sizes = [1, 8], strides = [1, 1]} : vector<1x392xf32> to vector<1x8xf32>
    %104 = vector.extract_strided_slice %9 {offsets = [0, 288], sizes = [1, 16], strides = [1, 1]} : vector<1x392xf32> to vector<1x16xf32>
    %cst_32 = arith.constant dense<0xFF800000> : vector<1xf32>
    %105 = vector.multi_reduction <maximumf>, %102, %cst_32 [1] : vector<1x16xf32> to vector<1xf32>
    %106 = vector.shape_cast %105 : vector<1xf32> to vector<1x1xf32>
    %107 = vector.broadcast %106 : vector<1x1xf32> to vector<1x16xf32>
    %108 = arith.subf %102, %107 : vector<1x16xf32>
    %109 = math.exp %108 : vector<1x16xf32>
    %cst_33 = arith.constant dense<0.000000e+00> : vector<1xf32>
    %110 = vector.multi_reduction <add>, %109, %cst_33 [1] : vector<1x16xf32> to vector<1xf32>
    %111 = vector.shape_cast %110 : vector<1xf32> to vector<1x1xf32>
    %112 = vector.broadcast %111 : vector<1x1xf32> to vector<1x16xf32>
    %113 = arith.divf %109, %112 : vector<1x16xf32>
    %114 = tpu.transpose %113, [1, 0] : vector<1x16xf32> -> vector<16x1xf32>
    %115 = vector.broadcast %114 : vector<16x1xf32> to vector<16x8xf32>
    %116 = vector.broadcast %101 : vector<1x8xf32> to vector<16x8xf32>
    %117 = arith.mulf %115, %116 : vector<16x8xf32>
    %cst_34 = arith.constant dense<0xFF800000> : vector<1xf32>
    %118 = vector.multi_reduction <maximumf>, %104, %cst_34 [1] : vector<1x16xf32> to vector<1xf32>
    %119 = vector.shape_cast %118 : vector<1xf32> to vector<1x1xf32>
    %120 = vector.broadcast %119 : vector<1x1xf32> to vector<1x16xf32>
    %121 = arith.subf %104, %120 : vector<1x16xf32>
    %122 = math.exp %121 : vector<1x16xf32>
    %cst_35 = arith.constant dense<0.000000e+00> : vector<1xf32>
    %123 = vector.multi_reduction <add>, %122, %cst_35 [1] : vector<1x16xf32> to vector<1xf32>
    %124 = vector.shape_cast %123 : vector<1xf32> to vector<1x1xf32>
    %125 = vector.broadcast %124 : vector<1x1xf32> to vector<1x16xf32>
    %126 = arith.divf %122, %125 : vector<1x16xf32>
    %127 = tpu.transpose %126, [1, 0] : vector<1x16xf32> -> vector<16x1xf32>
    %128 = vector.broadcast %127 : vector<16x1xf32> to vector<16x8xf32>
    %129 = vector.broadcast %103 : vector<1x8xf32> to vector<16x8xf32>
    %130 = arith.mulf %128, %129 : vector<16x8xf32>
    %131 = vector.extract_strided_slice %16 {offsets = [0, 2], sizes = [1, 1], strides = [1, 1]} : vector<1x8xf32> to vector<1x1xf32>
    %132 = vector.broadcast %10 : f32 to vector<1x1xf32>
    %133 = arith.mulf %132, %131 : vector<1x1xf32>
    %c2 = arith.constant 2 : index
    %c0_36 = arith.constant 0 : index
    %c0_37 = arith.constant 0 : index
    %134 = vector.load %arg6[%c2, %c0_36, %c0_37] : memref<8x16x8xf32, #tpu.memory_space<vmem>>, vector<1x16x8xf32>
    %135 = vector.shape_cast %134 : vector<1x16x8xf32> to vector<16x8xf32>
    %136 = arith.mulf %135, %117 : vector<16x8xf32>
    %137 = arith.addf %136, %130 : vector<16x8xf32>
    %138 = vector.broadcast %133 : vector<1x1xf32> to vector<16x8xf32>
    %139 = arith.mulf %138, %137 : vector<16x8xf32>
    %c2_38 = arith.constant 2 : index
    %c0_39 = arith.constant 0 : index
    %c0_40 = arith.constant 0 : index
    %140 = vector.load %arg7[%c2_38, %c0_39, %c0_40] : memref<8x16x8xf32, #tpu.memory_space<vmem>>, vector<1x16x8xf32>
    %141 = vector.shape_cast %140 : vector<1x16x8xf32> to vector<16x8xf32>
    %142 = vector.shape_cast %139 : vector<16x8xf32> to vector<1x16x8xf32>
    tpu.vector_store %arg7[%c2_38, %c0_39, %c0_40], %142 {strides = array<i32>} : memref<8x16x8xf32, #tpu.memory_space<vmem>>, vector<1x16x8xf32>,
    %143 = vector.extract_strided_slice %9 {offsets = [0, 24], sizes = [1, 8], strides = [1, 1]} : vector<1x392xf32> to vector<1x8xf32>
    %144 = vector.extract_strided_slice %9 {offsets = [0, 112], sizes = [1, 16], strides = [1, 1]} : vector<1x392xf32> to vector<1x16xf32>
    %145 = vector.extract_strided_slice %9 {offsets = [0, 216], sizes = [1, 8], strides = [1, 1]} : vector<1x392xf32> to vector<1x8xf32>
    %146 = vector.extract_strided_slice %9 {offsets = [0, 304], sizes = [1, 16], strides = [1, 1]} : vector<1x392xf32> to vector<1x16xf32>
    %cst_41 = arith.constant dense<0xFF800000> : vector<1xf32>
    %147 = vector.multi_reduction <maximumf>, %144, %cst_41 [1] : vector<1x16xf32> to vector<1xf32>
    %148 = vector.shape_cast %147 : vector<1xf32> to vector<1x1xf32>
    %149 = vector.broadcast %148 : vector<1x1xf32> to vector<1x16xf32>
    %150 = arith.subf %144, %149 : vector<1x16xf32>
    %151 = math.exp %150 : vector<1x16xf32>
    %cst_42 = arith.constant dense<0.000000e+00> : vector<1xf32>
    %152 = vector.multi_reduction <add>, %151, %cst_42 [1] : vector<1x16xf32> to vector<1xf32>
    %153 = vector.shape_cast %152 : vector<1xf32> to vector<1x1xf32>
    %154 = vector.broadcast %153 : vector<1x1xf32> to vector<1x16xf32>
    %155 = arith.divf %151, %154 : vector<1x16xf32>
    %156 = tpu.transpose %155, [1, 0] : vector<1x16xf32> -> vector<16x1xf32>
    %157 = vector.broadcast %156 : vector<16x1xf32> to vector<16x8xf32>
    %158 = vector.broadcast %143 : vector<1x8xf32> to vector<16x8xf32>
    %159 = arith.mulf %157, %158 : vector<16x8xf32>
    %cst_43 = arith.constant dense<0xFF800000> : vector<1xf32>
    %160 = vector.multi_reduction <maximumf>, %146, %cst_43 [1] : vector<1x16xf32> to vector<1xf32>
    %161 = vector.shape_cast %160 : vector<1xf32> to vector<1x1xf32>
    %162 = vector.broadcast %161 : vector<1x1xf32> to vector<1x16xf32>
    %163 = arith.subf %146, %162 : vector<1x16xf32>
    %164 = math.exp %163 : vector<1x16xf32>
    %cst_44 = arith.constant dense<0.000000e+00> : vector<1xf32>
    %165 = vector.multi_reduction <add>, %164, %cst_44 [1] : vector<1x16xf32> to vector<1xf32>
    %166 = vector.shape_cast %165 : vector<1xf32> to vector<1x1xf32>
    %167 = vector.broadcast %166 : vector<1x1xf32> to vector<1x16xf32>
    %168 = arith.divf %164, %167 : vector<1x16xf32>
    %169 = tpu.transpose %168, [1, 0] : vector<1x16xf32> -> vector<16x1xf32>
    %170 = vector.broadcast %169 : vector<16x1xf32> to vector<16x8xf32>
    %171 = vector.broadcast %145 : vector<1x8xf32> to vector<16x8xf32>
    %172 = arith.mulf %170, %171 : vector<16x8xf32>
    %173 = vector.extract_strided_slice %16 {offsets = [0, 3], sizes = [1, 1], strides = [1, 1]} : vector<1x8xf32> to vector<1x1xf32>
    %174 = vector.broadcast %10 : f32 to vector<1x1xf32>
    %175 = arith.mulf %174, %173 : vector<1x1xf32>
    %c3 = arith.constant 3 : index
    %c0_45 = arith.constant 0 : index
    %c0_46 = arith.constant 0 : index
    %176 = vector.load %arg6[%c3, %c0_45, %c0_46] : memref<8x16x8xf32, #tpu.memory_space<vmem>>, vector<1x16x8xf32>
    %177 = vector.shape_cast %176 : vector<1x16x8xf32> to vector<16x8xf32>
    %178 = arith.mulf %177, %159 : vector<16x8xf32>
    %179 = arith.addf %178, %172 : vector<16x8xf32>
    %180 = vector.broadcast %175 : vector<1x1xf32> to vector<16x8xf32>
    %181 = arith.mulf %180, %179 : vector<16x8xf32>
    %c3_47 = arith.constant 3 : index
    %c0_48 = arith.constant 0 : index
    %c0_49 = arith.constant 0 : index
    %182 = vector.load %arg7[%c3_47, %c0_48, %c0_49] : memref<8x16x8xf32, #tpu.memory_space<vmem>>, vector<1x16x8xf32>
    %183 = vector.shape_cast %182 : vector<1x16x8xf32> to vector<16x8xf32>
    %184 = vector.shape_cast %181 : vector<16x8xf32> to vector<1x16x8xf32>
    tpu.vector_store %arg7[%c3_47, %c0_48, %c0_49], %184 {strides = array<i32>} : memref<8x16x8xf32, #tpu.memory_space<vmem>>, vector<1x16x8xf32>,
    %185 = vector.extract_strided_slice %9 {offsets = [0, 32], sizes = [1, 8], strides = [1, 1]} : vector<1x392xf32> to vector<1x8xf32>
    %186 = vector.extract_strided_slice %9 {offsets = [0, 128], sizes = [1, 16], strides = [1, 1]} : vector<1x392xf32> to vector<1x16xf32>
    %187 = vector.extract_strided_slice %9 {offsets = [0, 224], sizes = [1, 8], strides = [1, 1]} : vector<1x392xf32> to vector<1x8xf32>
    %188 = vector.extract_strided_slice %9 {offsets = [0, 320], sizes = [1, 16], strides = [1, 1]} : vector<1x392xf32> to vector<1x16xf32>
    %cst_50 = arith.constant dense<0xFF800000> : vector<1xf32>
    %189 = vector.multi_reduction <maximumf>, %186, %cst_50 [1] : vector<1x16xf32> to vector<1xf32>
    %190 = vector.shape_cast %189 : vector<1xf32> to vector<1x1xf32>
    %191 = vector.broadcast %190 : vector<1x1xf32> to vector<1x16xf32>
    %192 = arith.subf %186, %191 : vector<1x16xf32>
    %193 = math.exp %192 : vector<1x16xf32>
    %cst_51 = arith.constant dense<0.000000e+00> : vector<1xf32>
    %194 = vector.multi_reduction <add>, %193, %cst_51 [1] : vector<1x16xf32> to vector<1xf32>
    %195 = vector.shape_cast %194 : vector<1xf32> to vector<1x1xf32>
    %196 = vector.broadcast %195 : vector<1x1xf32> to vector<1x16xf32>
    %197 = arith.divf %193, %196 : vector<1x16xf32>
    %198 = tpu.transpose %197, [1, 0] : vector<1x16xf32> -> vector<16x1xf32>
    %199 = vector.broadcast %198 : vector<16x1xf32> to vector<16x8xf32>
    %200 = vector.broadcast %185 : vector<1x8xf32> to vector<16x8xf32>
    %201 = arith.mulf %199, %200 : vector<16x8xf32>
    %cst_52 = arith.constant dense<0xFF800000> : vector<1xf32>
    %202 = vector.multi_reduction <maximumf>, %188, %cst_52 [1] : vector<1x16xf32> to vector<1xf32>
    %203 = vector.shape_cast %202 : vector<1xf32> to vector<1x1xf32>
    %204 = vector.broadcast %203 : vector<1x1xf32> to vector<1x16xf32>
    %205 = arith.subf %188, %204 : vector<1x16xf32>
    %206 = math.exp %205 : vector<1x16xf32>
    %cst_53 = arith.constant dense<0.000000e+00> : vector<1xf32>
    %207 = vector.multi_reduction <add>, %206, %cst_53 [1] : vector<1x16xf32> to vector<1xf32>
    %208 = vector.shape_cast %207 : vector<1xf32> to vector<1x1xf32>
    %209 = vector.broadcast %208 : vector<1x1xf32> to vector<1x16xf32>
    %210 = arith.divf %206, %209 : vector<1x16xf32>
    %211 = tpu.transpose %210, [1, 0] : vector<1x16xf32> -> vector<16x1xf32>
    %212 = vector.broadcast %211 : vector<16x1xf32> to vector<16x8xf32>
    %213 = vector.broadcast %187 : vector<1x8xf32> to vector<16x8xf32>
    %214 = arith.mulf %212, %213 : vector<16x8xf32>
    %215 = vector.extract_strided_slice %16 {offsets = [0, 4], sizes = [1, 1], strides = [1, 1]} : vector<1x8xf32> to vector<1x1xf32>
    %216 = vector.broadcast %10 : f32 to vector<1x1xf32>
    %217 = arith.mulf %216, %215 : vector<1x1xf32>
    %c4 = arith.constant 4 : index
    %c0_54 = arith.constant 0 : index
    %c0_55 = arith.constant 0 : index
    %218 = vector.load %arg6[%c4, %c0_54, %c0_55] : memref<8x16x8xf32, #tpu.memory_space<vmem>>, vector<1x16x8xf32>
    %219 = vector.shape_cast %218 : vector<1x16x8xf32> to vector<16x8xf32>
    %220 = arith.mulf %219, %201 : vector<16x8xf32>
    %221 = arith.addf %220, %214 : vector<16x8xf32>
    %222 = vector.broadcast %217 : vector<1x1xf32> to vector<16x8xf32>
    %223 = arith.mulf %222, %221 : vector<16x8xf32>
    %c4_56 = arith.constant 4 : index
    %c0_57 = arith.constant 0 : index
    %c0_58 = arith.constant 0 : index
    %224 = vector.load %arg7[%c4_56, %c0_57, %c0_58] : memref<8x16x8xf32, #tpu.memory_space<vmem>>, vector<1x16x8xf32>
    %225 = vector.shape_cast %224 : vector<1x16x8xf32> to vector<16x8xf32>
    %226 = vector.shape_cast %223 : vector<16x8xf32> to vector<1x16x8xf32>
    tpu.vector_store %arg7[%c4_56, %c0_57, %c0_58], %226 {strides = array<i32>} : memref<8x16x8xf32, #tpu.memory_space<vmem>>, vector<1x16x8xf32>,
    %227 = vector.extract_strided_slice %9 {offsets = [0, 40], sizes = [1, 8], strides = [1, 1]} : vector<1x392xf32> to vector<1x8xf32>
    %228 = vector.extract_strided_slice %9 {offsets = [0, 144], sizes = [1, 16], strides = [1, 1]} : vector<1x392xf32> to vector<1x16xf32>
    %229 = vector.extract_strided_slice %9 {offsets = [0, 232], sizes = [1, 8], strides = [1, 1]} : vector<1x392xf32> to vector<1x8xf32>
    %230 = vector.extract_strided_slice %9 {offsets = [0, 336], sizes = [1, 16], strides = [1, 1]} : vector<1x392xf32> to vector<1x16xf32>
    %cst_59 = arith.constant dense<0xFF800000> : vector<1xf32>
    %231 = vector.multi_reduction <maximumf>, %228, %cst_59 [1] : vector<1x16xf32> to vector<1xf32>
    %232 = vector.shape_cast %231 : vector<1xf32> to vector<1x1xf32>
    %233 = vector.broadcast %232 : vector<1x1xf32> to vector<1x16xf32>
    %234 = arith.subf %228, %233 : vector<1x16xf32>
    %235 = math.exp %234 : vector<1x16xf32>
    %cst_60 = arith.constant dense<0.000000e+00> : vector<1xf32>
    %236 = vector.multi_reduction <add>, %235, %cst_60 [1] : vector<1x16xf32> to vector<1xf32>
    %237 = vector.shape_cast %236 : vector<1xf32> to vector<1x1xf32>
    %238 = vector.broadcast %237 : vector<1x1xf32> to vector<1x16xf32>
    %239 = arith.divf %235, %238 : vector<1x16xf32>
    %240 = tpu.transpose %239, [1, 0] : vector<1x16xf32> -> vector<16x1xf32>
    %241 = vector.broadcast %240 : vector<16x1xf32> to vector<16x8xf32>
    %242 = vector.broadcast %227 : vector<1x8xf32> to vector<16x8xf32>
    %243 = arith.mulf %241, %242 : vector<16x8xf32>
    %cst_61 = arith.constant dense<0xFF800000> : vector<1xf32>
    %244 = vector.multi_reduction <maximumf>, %230, %cst_61 [1] : vector<1x16xf32> to vector<1xf32>
    %245 = vector.shape_cast %244 : vector<1xf32> to vector<1x1xf32>
    %246 = vector.broadcast %245 : vector<1x1xf32> to vector<1x16xf32>
    %247 = arith.subf %230, %246 : vector<1x16xf32>
    %248 = math.exp %247 : vector<1x16xf32>
    %cst_62 = arith.constant dense<0.000000e+00> : vector<1xf32>
    %249 = vector.multi_reduction <add>, %248, %cst_62 [1] : vector<1x16xf32> to vector<1xf32>
    %250 = vector.shape_cast %249 : vector<1xf32> to vector<1x1xf32>
    %251 = vector.broadcast %250 : vector<1x1xf32> to vector<1x16xf32>
    %252 = arith.divf %248, %251 : vector<1x16xf32>
    %253 = tpu.transpose %252, [1, 0] : vector<1x16xf32> -> vector<16x1xf32>
    %254 = vector.broadcast %253 : vector<16x1xf32> to vector<16x8xf32>
    %255 = vector.broadcast %229 : vector<1x8xf32> to vector<16x8xf32>
    %256 = arith.mulf %254, %255 : vector<16x8xf32>
    %257 = vector.extract_strided_slice %16 {offsets = [0, 5], sizes = [1, 1], strides = [1, 1]} : vector<1x8xf32> to vector<1x1xf32>
    %258 = vector.broadcast %10 : f32 to vector<1x1xf32>
    %259 = arith.mulf %258, %257 : vector<1x1xf32>
    %c5 = arith.constant 5 : index
    %c0_63 = arith.constant 0 : index
    %c0_64 = arith.constant 0 : index
    %260 = vector.load %arg6[%c5, %c0_63, %c0_64] : memref<8x16x8xf32, #tpu.memory_space<vmem>>, vector<1x16x8xf32>
    %261 = vector.shape_cast %260 : vector<1x16x8xf32> to vector<16x8xf32>
    %262 = arith.mulf %261, %243 : vector<16x8xf32>
    %263 = arith.addf %262, %256 : vector<16x8xf32>
    %264 = vector.broadcast %259 : vector<1x1xf32> to vector<16x8xf32>
    %265 = arith.mulf %264, %263 : vector<16x8xf32>
    %c5_65 = arith.constant 5 : index
    %c0_66 = arith.constant 0 : index
    %c0_67 = arith.constant 0 : index
    %266 = vector.load %arg7[%c5_65, %c0_66, %c0_67] : memref<8x16x8xf32, #tpu.memory_space<vmem>>, vector<1x16x8xf32>
    %267 = vector.shape_cast %266 : vector<1x16x8xf32> to vector<16x8xf32>
    %268 = vector.shape_cast %265 : vector<16x8xf32> to vector<1x16x8xf32>
    tpu.vector_store %arg7[%c5_65, %c0_66, %c0_67], %268 {strides = array<i32>} : memref<8x16x8xf32, #tpu.memory_space<vmem>>, vector<1x16x8xf32>,
    %269 = vector.extract_strided_slice %9 {offsets = [0, 48], sizes = [1, 8], strides = [1, 1]} : vector<1x392xf32> to vector<1x8xf32>
    %270 = vector.extract_strided_slice %9 {offsets = [0, 160], sizes = [1, 16], strides = [1, 1]} : vector<1x392xf32> to vector<1x16xf32>
    %271 = vector.extract_strided_slice %9 {offsets = [0, 240], sizes = [1, 8], strides = [1, 1]} : vector<1x392xf32> to vector<1x8xf32>
    %272 = vector.extract_strided_slice %9 {offsets = [0, 352], sizes = [1, 16], strides = [1, 1]} : vector<1x392xf32> to vector<1x16xf32>
    %cst_68 = arith.constant dense<0xFF800000> : vector<1xf32>
    %273 = vector.multi_reduction <maximumf>, %270, %cst_68 [1] : vector<1x16xf32> to vector<1xf32>
    %274 = vector.shape_cast %273 : vector<1xf32> to vector<1x1xf32>
    %275 = vector.broadcast %274 : vector<1x1xf32> to vector<1x16xf32>
    %276 = arith.subf %270, %275 : vector<1x16xf32>
    %277 = math.exp %276 : vector<1x16xf32>
    %cst_69 = arith.constant dense<0.000000e+00> : vector<1xf32>
    %278 = vector.multi_reduction <add>, %277, %cst_69 [1] : vector<1x16xf32> to vector<1xf32>
    %279 = vector.shape_cast %278 : vector<1xf32> to vector<1x1xf32>
    %280 = vector.broadcast %279 : vector<1x1xf32> to vector<1x16xf32>
    %281 = arith.divf %277, %280 : vector<1x16xf32>
    %282 = tpu.transpose %281, [1, 0] : vector<1x16xf32> -> vector<16x1xf32>
    %283 = vector.broadcast %282 : vector<16x1xf32> to vector<16x8xf32>
    %284 = vector.broadcast %269 : vector<1x8xf32> to vector<16x8xf32>
    %285 = arith.mulf %283, %284 : vector<16x8xf32>
    %cst_70 = arith.constant dense<0xFF800000> : vector<1xf32>
    %286 = vector.multi_reduction <maximumf>, %272, %cst_70 [1] : vector<1x16xf32> to vector<1xf32>
    %287 = vector.shape_cast %286 : vector<1xf32> to vector<1x1xf32>
    %288 = vector.broadcast %287 : vector<1x1xf32> to vector<1x16xf32>
    %289 = arith.subf %272, %288 : vector<1x16xf32>
    %290 = math.exp %289 : vector<1x16xf32>
    %cst_71 = arith.constant dense<0.000000e+00> : vector<1xf32>
    %291 = vector.multi_reduction <add>, %290, %cst_71 [1] : vector<1x16xf32> to vector<1xf32>
    %292 = vector.shape_cast %291 : vector<1xf32> to vector<1x1xf32>
    %293 = vector.broadcast %292 : vector<1x1xf32> to vector<1x16xf32>
    %294 = arith.divf %290, %293 : vector<1x16xf32>
    %295 = tpu.transpose %294, [1, 0] : vector<1x16xf32> -> vector<16x1xf32>
    %296 = vector.broadcast %295 : vector<16x1xf32> to vector<16x8xf32>
    %297 = vector.broadcast %271 : vector<1x8xf32> to vector<16x8xf32>
    %298 = arith.mulf %296, %297 : vector<16x8xf32>
    %299 = vector.extract_strided_slice %16 {offsets = [0, 6], sizes = [1, 1], strides = [1, 1]} : vector<1x8xf32> to vector<1x1xf32>
    %300 = vector.broadcast %10 : f32 to vector<1x1xf32>
    %301 = arith.mulf %300, %299 : vector<1x1xf32>
    %c6 = arith.constant 6 : index
    %c0_72 = arith.constant 0 : index
    %c0_73 = arith.constant 0 : index
    %302 = vector.load %arg6[%c6, %c0_72, %c0_73] : memref<8x16x8xf32, #tpu.memory_space<vmem>>, vector<1x16x8xf32>
    %303 = vector.shape_cast %302 : vector<1x16x8xf32> to vector<16x8xf32>
    %304 = arith.mulf %303, %285 : vector<16x8xf32>
    %305 = arith.addf %304, %298 : vector<16x8xf32>
    %306 = vector.broadcast %301 : vector<1x1xf32> to vector<16x8xf32>
    %307 = arith.mulf %306, %305 : vector<16x8xf32>
    %c6_74 = arith.constant 6 : index
    %c0_75 = arith.constant 0 : index
    %c0_76 = arith.constant 0 : index
    %308 = vector.load %arg7[%c6_74, %c0_75, %c0_76] : memref<8x16x8xf32, #tpu.memory_space<vmem>>, vector<1x16x8xf32>
    %309 = vector.shape_cast %308 : vector<1x16x8xf32> to vector<16x8xf32>
    %310 = vector.shape_cast %307 : vector<16x8xf32> to vector<1x16x8xf32>
    tpu.vector_store %arg7[%c6_74, %c0_75, %c0_76], %310 {strides = array<i32>} : memref<8x16x8xf32, #tpu.memory_space<vmem>>, vector<1x16x8xf32>,
    %311 = vector.extract_strided_slice %9 {offsets = [0, 56], sizes = [1, 8], strides = [1, 1]} : vector<1x392xf32> to vector<1x8xf32>
    %312 = vector.extract_strided_slice %9 {offsets = [0, 176], sizes = [1, 16], strides = [1, 1]} : vector<1x392xf32> to vector<1x16xf32>
    %313 = vector.extract_strided_slice %9 {offsets = [0, 248], sizes = [1, 8], strides = [1, 1]} : vector<1x392xf32> to vector<1x8xf32>
    %314 = vector.extract_strided_slice %9 {offsets = [0, 368], sizes = [1, 16], strides = [1, 1]} : vector<1x392xf32> to vector<1x16xf32>
    %cst_77 = arith.constant dense<0xFF800000> : vector<1xf32>
    %315 = vector.multi_reduction <maximumf>, %312, %cst_77 [1] : vector<1x16xf32> to vector<1xf32>
    %316 = vector.shape_cast %315 : vector<1xf32> to vector<1x1xf32>
    %317 = vector.broadcast %316 : vector<1x1xf32> to vector<1x16xf32>
    %318 = arith.subf %312, %317 : vector<1x16xf32>
    %319 = math.exp %318 : vector<1x16xf32>
    %cst_78 = arith.constant dense<0.000000e+00> : vector<1xf32>
    %320 = vector.multi_reduction <add>, %319, %cst_78 [1] : vector<1x16xf32> to vector<1xf32>
    %321 = vector.shape_cast %320 : vector<1xf32> to vector<1x1xf32>
    %322 = vector.broadcast %321 : vector<1x1xf32> to vector<1x16xf32>
    %323 = arith.divf %319, %322 : vector<1x16xf32>
    %324 = tpu.transpose %323, [1, 0] : vector<1x16xf32> -> vector<16x1xf32>
    %325 = vector.broadcast %324 : vector<16x1xf32> to vector<16x8xf32>
    %326 = vector.broadcast %311 : vector<1x8xf32> to vector<16x8xf32>
    %327 = arith.mulf %325, %326 : vector<16x8xf32>
    %cst_79 = arith.constant dense<0xFF800000> : vector<1xf32>
    %328 = vector.multi_reduction <maximumf>, %314, %cst_79 [1] : vector<1x16xf32> to vector<1xf32>
    %329 = vector.shape_cast %328 : vector<1xf32> to vector<1x1xf32>
    %330 = vector.broadcast %329 : vector<1x1xf32> to vector<1x16xf32>
    %331 = arith.subf %314, %330 : vector<1x16xf32>
    %332 = math.exp %331 : vector<1x16xf32>
    %cst_80 = arith.constant dense<0.000000e+00> : vector<1xf32>
    %333 = vector.multi_reduction <add>, %332, %cst_80 [1] : vector<1x16xf32> to vector<1xf32>
    %334 = vector.shape_cast %333 : vector<1xf32> to vector<1x1xf32>
    %335 = vector.broadcast %334 : vector<1x1xf32> to vector<1x16xf32>
    %336 = arith.divf %332, %335 : vector<1x16xf32>
    %337 = tpu.transpose %336, [1, 0] : vector<1x16xf32> -> vector<16x1xf32>
    %338 = vector.broadcast %337 : vector<16x1xf32> to vector<16x8xf32>
    %339 = vector.broadcast %313 : vector<1x8xf32> to vector<16x8xf32>
    %340 = arith.mulf %338, %339 : vector<16x8xf32>
    %341 = vector.extract_strided_slice %16 {offsets = [0, 7], sizes = [1, 1], strides = [1, 1]} : vector<1x8xf32> to vector<1x1xf32>
    %342 = vector.broadcast %10 : f32 to vector<1x1xf32>
    %343 = arith.mulf %342, %341 : vector<1x1xf32>
    %c7 = arith.constant 7 : index
    %c0_81 = arith.constant 0 : index
    %c0_82 = arith.constant 0 : index
    %344 = vector.load %arg6[%c7, %c0_81, %c0_82] : memref<8x16x8xf32, #tpu.memory_space<vmem>>, vector<1x16x8xf32>
    %345 = vector.shape_cast %344 : vector<1x16x8xf32> to vector<16x8xf32>
    %346 = arith.mulf %345, %327 : vector<16x8xf32>
    %347 = arith.addf %346, %340 : vector<16x8xf32>
    %348 = vector.broadcast %343 : vector<1x1xf32> to vector<16x8xf32>
    %349 = arith.mulf %348, %347 : vector<16x8xf32>
    %c7_83 = arith.constant 7 : index
    %c0_84 = arith.constant 0 : index
    %c0_85 = arith.constant 0 : index
    %350 = vector.load %arg7[%c7_83, %c0_84, %c0_85] : memref<8x16x8xf32, #tpu.memory_space<vmem>>, vector<1x16x8xf32>
    %351 = vector.shape_cast %350 : vector<1x16x8xf32> to vector<16x8xf32>
    %352 = vector.shape_cast %349 : vector<16x8xf32> to vector<1x16x8xf32>
    tpu.vector_store %arg7[%c7_83, %c0_84, %c0_85], %352 {strides = array<i32>} : memref<8x16x8xf32, #tpu.memory_space<vmem>>, vector<1x16x8xf32>,
    return
  }
}

</mosaic_0001>

<llo_original>
// kernel: tpu_custom_call.1
$region0: #{tpu_custom_call.1}
  #allocation0 [shape = 'u32[]', space=smem, size = 0x4, offset = 0x4, fixed_abs, tag = 'smem constant byte address 0x4 - core index']
  #allocation1 [shape = 'u32[72,128]{1,0:T(1,128)}', space=vmem, size = 0x9000, scoped, tag = 'internal scratch']
  #allocation2 [shape = 'f32[1,1]{1,0:T(1,128)S(6)}', space=smem, size = 0x200, scoped, tag = 'scoped memory for tpu_custom_call.1']
  %s0 = inlined_call_operand.<no memory space> [shape: f32[1,1], index: 0, kind: input, shape index: {}]
  %s1 = inlined_call_operand.vmem [shape: f32[1,64], index: 1, kind: input, shape index: {}]
  %s2 = inlined_call_operand.vmem [shape: f32[64,256], index: 2, kind: input, shape index: {}]
  %s3 = inlined_call_operand.vmem [shape: f32[1,256], index: 3, kind: input, shape index: {}]
  %s4 = inlined_call_operand.vmem [shape: f32[256,392], index: 4, kind: input, shape index: {}]
  %s5 = inlined_call_operand.vmem [shape: f32[1,392], index: 5, kind: input, shape index: {}]
  %s6 = inlined_call_operand.vmem [shape: f32[8,16,8], index: 6, kind: input, shape index: {}]
  %s7 = inlined_call_operand.vmem [shape: f32[8,16,8], index: 7, kind: output, shape index: {}]
  %s8 = sld [smem:[#allocation0]]
  $region38: #{tpu_custom_call.1} parent=0
    _
  %s10 = ssub.s32 1, %s8
  %s11 = scalar_select 0, %s10, %s8
  %12 = sst [smem:[#allocation2]] %s0
  // Predicated region
  $region2: #{tpu_custom_call.1} parent=0 // pred_check
    _
  $region3: #{tpu_custom_call.1} parent=0 // pred_check_branch
    %14 = sbr.rel (0) target = $region5
  $region4: #{tpu_custom_call.1} parent=0 // pred_region
    _
  $region5: #{tpu_custom_call.1} parent=0 // pred_fallthru
    _
  // Predicated region
  $region6: #{tpu_custom_call.1} parent=0 // pred_check
    _
  $region7: #{tpu_custom_call.1} parent=0 // pred_check_branch
    %16 = sbr.rel (0) target = $region9
  $region8: #{tpu_custom_call.1} parent=0 // pred_region
    _
  $region9: #{tpu_custom_call.1} parent=0 // pred_fallthru
    _
  // Predicated region
  $region10: #{tpu_custom_call.1} parent=0 // pred_check
    _
  $region11: #{tpu_custom_call.1} parent=0 // pred_check_branch
    %18 = sbr.rel (0) target = $region13
  $region12: #{tpu_custom_call.1} parent=0 // pred_region
    _
  $region13: #{tpu_custom_call.1} parent=0 // pred_fallthru
    _
  // Predicated region
  $region14: #{tpu_custom_call.1} parent=0 // pred_check
    _
  $region15: #{tpu_custom_call.1} parent=0 // pred_check_branch
    %20 = sbr.rel (0) target = $region17
  $region16: #{tpu_custom_call.1} parent=0 // pred_region
    _
  $region17: #{tpu_custom_call.1} parent=0 // pred_fallthru
    _
  // Predicated region
  $region18: #{tpu_custom_call.1} parent=0 // pred_check
    _
  $region19: #{tpu_custom_call.1} parent=0 // pred_check_branch
    %22 = sbr.rel (0) target = $region21
  $region20: #{tpu_custom_call.1} parent=0 // pred_region
    _
  $region21: #{tpu_custom_call.1} parent=0 // pred_fallthru
    _
  // Predicated region
  $region22: #{tpu_custom_call.1} parent=0 // pred_check
    _
  $region23: #{tpu_custom_call.1} parent=0 // pred_check_branch
    %24 = sbr.rel (0) target = $region25
  $region24: #{tpu_custom_call.1} parent=0 // pred_region
    _
  $region25: #{tpu_custom_call.1} parent=0 // pred_fallthru
    _
  // Predicated region
  $region26: #{tpu_custom_call.1} parent=0 // pred_check
    _
  $region27: #{tpu_custom_call.1} parent=0 // pred_check_branch
    %26 = sbr.rel (0) target = $region29
  $region28: #{tpu_custom_call.1} parent=0 // pred_region
    _
  $region29: #{tpu_custom_call.1} parent=0 // pred_fallthru
    _
  %v27 = vld [vmem:[%s1] sm:$0x1]
  %v28 = vld [vmem:[%s2] sm:$0xff]
  %v29 = vld [vmem:[%s2 + $0x8] sm:$0xff]
  %v30 = vld [vmem:[%s2 + $0x10] sm:$0xff]
  %v31 = vld [vmem:[%s2 + $0x18] sm:$0xff]
  %v32 = vld [vmem:[%s2 + $0x20] sm:$0xff]
  %v33 = vld [vmem:[%s2 + $0x28] sm:$0xff]
  %v34 = vld [vmem:[%s2 + $0x30] sm:$0xff]
  %v35 = vld [vmem:[%s2 + $0x38] sm:$0xff]
  %v36 = vld [vmem:[%s2 + $0x40] sm:$0xff]
  %v37 = vld [vmem:[%s2 + $0x48] sm:$0xff]
  %v38 = vld [vmem:[%s2 + $0x50] sm:$0xff]
  %v39 = vld [vmem:[%s2 + $0x58] sm:$0xff]
  %v40 = vld [vmem:[%s2 + $0x60] sm:$0xff]
  %v41 = vld [vmem:[%s2 + $0x68] sm:$0xff]
  %v42 = vld [vmem:[%s2 + $0x70] sm:$0xff]
  %v43 = vld [vmem:[%s2 + $0x78] sm:$0xff]
  %v44 = vld [vmem:[%s3] sm:$0x3]
  %v46 = vperm.slane %v44, 0
  %v47 = vperm.slane %v44, 1
  %vm50 = vcmask 523264
  %v52 = vsel %vm50, %v27, 0
  %54 = vmatpush.msra.mxu0 0.0
  %55 = vmatpush.msra.mxu0 0.0
  %56 = vmatpush.msra.mxu0 0.0
  %57 = vmatpush.msra.mxu0 0.0
  %58 = vmatpush.msra.mxu0 0.0
  %59 = vmatpush.msra.mxu0 0.0
  %60 = vmatpush.msra.mxu0 0.0
  %61 = vmatpush.msra.mxu0 0.0
  %62 = vmatpush.msra.mxu0 %v42
  %63 = vmatpush.msra.mxu0 %v40
  %64 = vmatpush.msra.mxu0 %v38
  %65 = vmatpush.msra.mxu0 %v36
  %66 = vmatpush.msra.mxu0 %v34
  %67 = vmatpush.msra.mxu0 %v32
  %68 = vmatpush.msra.mxu0 %v30
  %69 = vmatpush.msra.mxu0 %v28
  %70 = vmatmul.f32.gmra.mxu0 %v52
  %v71 = vpop.f32.mrf.mxu0
  %v72 = vadd.f32 %v46, %v71
  %73 = vdwg.mxu0
  %74 = vmatpush.msra.mxu0 0.0
  %75 = vmatpush.msra.mxu0 0.0
  %76 = vmatpush.msra.mxu0 0.0
  %77 = vmatpush.msra.mxu0 0.0
  %78 = vmatpush.msra.mxu0 0.0
  %79 = vmatpush.msra.mxu0 0.0
  %80 = vmatpush.msra.mxu0 0.0
  %81 = vmatpush.msra.mxu0 0.0
  %82 = vmatpush.msra.mxu0 %v43
  %83 = vmatpush.msra.mxu0 %v41
  %84 = vmatpush.msra.mxu0 %v39
  %85 = vmatpush.msra.mxu0 %v37
  %86 = vmatpush.msra.mxu0 %v35
  %87 = vmatpush.msra.mxu0 %v33
  %88 = vmatpush.msra.mxu0 %v31
  %89 = vmatpush.msra.mxu0 %v29
  %90 = vmatmul.f32.gmra.mxu0 %v52
  %v91 = vpop.f32.mrf.mxu0
  %v92 = vadd.f32 %v47, %v91
  %93 = vdwg.mxu0
  %v94 = vtanh.pop %v72
  %v95 = vtanh.pop %v92
  %v96 = vld [vmem:[%s4] sm:$0xff]
  %v97 = vld [vmem:[%s4 + $0x8] sm:$0xff]
  %v98 = vld [vmem:[%s4 + $0x10] sm:$0xff]
  %v99 = vld [vmem:[%s4 + $0x18] sm:$0xff]
  %v100 = vld [vmem:[%s4 + $0x20] sm:$0xff]
  %v101 = vld [vmem:[%s4 + $0x28] sm:$0xff]
  %v102 = vld [vmem:[%s4 + $0x30] sm:$0xff]
  %v103 = vld [vmem:[%s4 + $0x38] sm:$0xff]
  %v104 = vld [vmem:[%s4 + $0x40] sm:$0xff]
  %v105 = vld [vmem:[%s4 + $0x48] sm:$0xff]
  %v106 = vld [vmem:[%s4 + $0x50] sm:$0xff]
  %v107 = vld [vmem:[%s4 + $0x58] sm:$0xff]
  %v108 = vld [vmem:[%s4 + $0x60] sm:$0xff]
  %v109 = vld [vmem:[%s4 + $0x68] sm:$0xff]
  %v110 = vld [vmem:[%s4 + $0x70] sm:$0xff]
  %v111 = vld [vmem:[%s4 + $0x78] sm:$0xff]
  %v112 = vld [vmem:[%s4 + $0x80] sm:$0xff]
  %v113 = vld [vmem:[%s4 + $0x88] sm:$0xff]
  %v114 = vld [vmem:[%s4 + $0x90] sm:$0xff]
  %v115 = vld [vmem:[%s4 + $0x98] sm:$0xff]
  %v116 = vld [vmem:[%s4 + $0xa0] sm:$0xff]
  %v117 = vld [vmem:[%s4 + $0xa8] sm:$0xff]
  %v118 = vld [vmem:[%s4 + $0xb0] sm:$0xff]
  %v119 = vld [vmem:[%s4 + $0xb8] sm:$0xff]
  %v120 = vld [vmem:[%s4 + $0xc0] sm:$0xff]
  %v121 = vld [vmem:[%s4 + $0xc8] sm:$0xff]
  %v122 = vld [vmem:[%s4 + $0xd0] sm:$0xff]
  %v123 = vld [vmem:[%s4 + $0xd8] sm:$0xff]
  %v124 = vld [vmem:[%s4 + $0xe0] sm:$0xff]
  %v125 = vld [vmem:[%s4 + $0xe8] sm:$0xff]
  %v126 = vld [vmem:[%s4 + $0xf0] sm:$0xff]
  %v127 = vld [vmem:[%s4 + $0xf8] sm:$0xff]
  %v128 = vld [vmem:[%s4 + $0x100] sm:$0xff]
  %v129 = vld [vmem:[%s4 + $0x108] sm:$0xff]
  %v130 = vld [vmem:[%s4 + $0x110] sm:$0xff]
  %v131 = vld [vmem:[%s4 + $0x118] sm:$0xff]
  %v132 = vld [vmem:[%s4 + $0x120] sm:$0xff]
  %v133 = vld [vmem:[%s4 + $0x128] sm:$0xff]
  %v134 = vld [vmem:[%s4 + $0x130] sm:$0xff]
  %v135 = vld [vmem:[%s4 + $0x138] sm:$0xff]
  %v136 = vld [vmem:[%s4 + $0x140] sm:$0xff]
  %v137 = vld [vmem:[%s4 + $0x148] sm:$0xff]
  %v138 = vld [vmem:[%s4 + $0x150] sm:$0xff]
  %v139 = vld [vmem:[%s4 + $0x158] sm:$0xff]
  %v140 = vld [vmem:[%s4 + $0x160] sm:$0xff]
  %v141 = vld [vmem:[%s4 + $0x168] sm:$0xff]
  %v142 = vld [vmem:[%s4 + $0x170] sm:$0xff]
  %v143 = vld [vmem:[%s4 + $0x178] sm:$0xff]
  %v144 = vld [vmem:[%s4 + $0x180] sm:$0xff]
  %v145 = vld [vmem:[%s4 + $0x188] sm:$0xff]
  %v146 = vld [vmem:[%s4 + $0x190] sm:$0xff]
  %v147 = vld [vmem:[%s4 + $0x198] sm:$0xff]
  %v148 = vld [vmem:[%s4 + $0x1a0] sm:$0xff]
  %v149 = vld [vmem:[%s4 + $0x1a8] sm:$0xff]
  %v150 = vld [vmem:[%s4 + $0x1b0] sm:$0xff]
  %v151 = vld [vmem:[%s4 + $0x1b8] sm:$0xff]
  %v152 = vld [vmem:[%s4 + $0x1c0] sm:$0xff]
  %v153 = vld [vmem:[%s4 + $0x1c8] sm:$0xff]
  %v154 = vld [vmem:[%s4 + $0x1d0] sm:$0xff]
  %v155 = vld [vmem:[%s4 + $0x1d8] sm:$0xff]
  %v156 = vld [vmem:[%s4 + $0x1e0] sm:$0xff]
  %v157 = vld [vmem:[%s4 + $0x1e8] sm:$0xff]
  %v158 = vld [vmem:[%s4 + $0x1f0] sm:$0xff]
  %v159 = vld [vmem:[%s4 + $0x1f8] sm:$0xff]
  %v160 = vld [vmem:[%s4 + $0x200] sm:$0xff]
  %v161 = vld [vmem:[%s4 + $0x208] sm:$0xff]
  %v162 = vld [vmem:[%s4 + $0x210] sm:$0xff]
  %v163 = vld [vmem:[%s4 + $0x218] sm:$0xff]
  %v164 = vld [vmem:[%s4 + $0x220] sm:$0xff]
  %v165 = vld [vmem:[%s4 + $0x228] sm:$0xff]
  %v166 = vld [vmem:[%s4 + $0x230] sm:$0xff]
  %v167 = vld [vmem:[%s4 + $0x238] sm:$0xff]
  %v168 = vld [vmem:[%s4 + $0x240] sm:$0xff]
  %v169 = vld [vmem:[%s4 + $0x248] sm:$0xff]
  %v170 = vld [vmem:[%s4 + $0x250] sm:$0xff]
  %v171 = vld [vmem:[%s4 + $0x258] sm:$0xff]
  %v172 = vld [vmem:[%s4 + $0x260] sm:$0xff]
  %v173 = vld [vmem:[%s4 + $0x268] sm:$0xff]
  %v174 = vld [vmem:[%s4 + $0x270] sm:$0xff]
  %v175 = vld [vmem:[%s4 + $0x278] sm:$0xff]
  %v176 = vld [vmem:[%s4 + $0x280] sm:$0xff]
  %v177 = vld [vmem:[%s4 + $0x288] sm:$0xff]
  %v178 = vld [vmem:[%s4 + $0x290] sm:$0xff]
  %v179 = vld [vmem:[%s4 + $0x298] sm:$0xff]
  %v180 = vld [vmem:[%s4 + $0x2a0] sm:$0xff]
  %v181 = vld [vmem:[%s4 + $0x2a8] sm:$0xff]
  %v182 = vld [vmem:[%s4 + $0x2b0] sm:$0xff]
  %v183 = vld [vmem:[%s4 + $0x2b8] sm:$0xff]
  %v184 = vld [vmem:[%s4 + $0x2c0] sm:$0xff]
  %v185 = vld [vmem:[%s4 + $0x2c8] sm:$0xff]
  %v186 = vld [vmem:[%s4 + $0x2d0] sm:$0xff]
  %v187 = vld [vmem:[%s4 + $0x2d8] sm:$0xff]
  %v188 = vld [vmem:[%s4 + $0x2e0] sm:$0xff]
  %v189 = vld [vmem:[%s4 + $0x2e8] sm:$0xff]
  %v190 = vld [vmem:[%s4 + $0x2f0] sm:$0xff]
  %v191 = vld [vmem:[%s4 + $0x2f8] sm:$0xff]
  %v192 = vld [vmem:[%s4 + $0x300] sm:$0xff]
  %v193 = vld [vmem:[%s4 + $0x308] sm:$0xff]
  %v194 = vld [vmem:[%s4 + $0x310] sm:$0xff]
  %v195 = vld [vmem:[%s4 + $0x318] sm:$0xff]
  %v196 = vld [vmem:[%s4 + $0x320] sm:$0xff]
  %v197 = vld [vmem:[%s4 + $0x328] sm:$0xff]
  %v198 = vld [vmem:[%s4 + $0x330] sm:$0xff]
  %v199 = vld [vmem:[%s4 + $0x338] sm:$0xff]
  %v200 = vld [vmem:[%s4 + $0x340] sm:$0xff]
  %v201 = vld [vmem:[%s4 + $0x348] sm:$0xff]
  %v202 = vld [vmem:[%s4 + $0x350] sm:$0xff]
  %v203 = vld [vmem:[%s4 + $0x358] sm:$0xff]
  %v204 = vld [vmem:[%s4 + $0x360] sm:$0xff]
  %v205 = vld [vmem:[%s4 + $0x368] sm:$0xff]
  %v206 = vld [vmem:[%s4 + $0x370] sm:$0xff]
  %v207 = vld [vmem:[%s4 + $0x378] sm:$0xff]
  %v208 = vld [vmem:[%s4 + $0x380] sm:$0xff]
  %v209 = vld [vmem:[%s4 + $0x388] sm:$0xff]
  %v210 = vld [vmem:[%s4 + $0x390] sm:$0xff]
  %v211 = vld [vmem:[%s4 + $0x398] sm:$0xff]
  %v212 = vld [vmem:[%s4 + $0x3a0] sm:$0xff]
  %v213 = vld [vmem:[%s4 + $0x3a8] sm:$0xff]
  %v214 = vld [vmem:[%s4 + $0x3b0] sm:$0xff]
  %v215 = vld [vmem:[%s4 + $0x3b8] sm:$0xff]
  %v216 = vld [vmem:[%s4 + $0x3c0] sm:$0xff]
  %v217 = vld [vmem:[%s4 + $0x3c8] sm:$0xff]
  %v218 = vld [vmem:[%s4 + $0x3d0] sm:$0xff]
  %v219 = vld [vmem:[%s4 + $0x3d8] sm:$0xff]
  %v220 = vld [vmem:[%s4 + $0x3e0] sm:$0xff]
  %v221 = vld [vmem:[%s4 + $0x3e8] sm:$0xff]
  %v222 = vld [vmem:[%s4 + $0x3f0] sm:$0xff]
  %v223 = vld [vmem:[%s4 + $0x3f8] sm:$0xff]
  %v224 = vld [vmem:[%s5] sm:$0xf]
  %v226 = vperm.slane %v224, 0
  %v227 = vperm.slane %v224, 1
  %v228 = vperm.slane %v224, 2
  %v229 = vperm.slane %v224, 3
  %234 = vmatpush.msra.mxu0 %v156
  %235 = vmatpush.msra.mxu0 %v152
  %236 = vmatpush.msra.mxu0 %v148
  %237 = vmatpush.msra.mxu0 %v144
  %238 = vmatpush.msra.mxu0 %v140
  %239 = vmatpush.msra.mxu0 %v136
  %240 = vmatpush.msra.mxu0 %v132
  %241 = vmatpush.msra.mxu0 %v128
  %242 = vmatpush.msra.mxu0 %v124
  %243 = vmatpush.msra.mxu0 %v120
  %244 = vmatpush.msra.mxu0 %v116
  %245 = vmatpush.msra.mxu0 %v112
  %246 = vmatpush.msra.mxu0 %v108
  %247 = vmatpush.msra.mxu0 %v104
  %248 = vmatpush.msra.mxu0 %v100
  %249 = vmatpush.msra.mxu0 %v96
  %250 = vmatmul.f32.gmra.mxu0 %v94
  %v251 = vpop.f32.mrf.mxu0
  %v252 = vadd.f32 %v226, %v251
  %253 = vdwg.mxu0
  %254 = vmatpush.msra.mxu0 %v220
  %255 = vmatpush.msra.mxu0 %v216
  %256 = vmatpush.msra.mxu0 %v212
  %257 = vmatpush.msra.mxu0 %v208
  %258 = vmatpush.msra.mxu0 %v204
  %259 = vmatpush.msra.mxu0 %v200
  %260 = vmatpush.msra.mxu0 %v196
  %261 = vmatpush.msra.mxu0 %v192
  %262 = vmatpush.msra.mxu0 %v188
  %263 = vmatpush.msra.mxu0 %v184
  %264 = vmatpush.msra.mxu0 %v180
  %265 = vmatpush.msra.mxu0 %v176
  %266 = vmatpush.msra.mxu0 %v172
  %267 = vmatpush.msra.mxu0 %v168
  %268 = vmatpush.msra.mxu0 %v164
  %269 = vmatpush.msra.mxu0 %v160
  %270 = vmatmul.f32.gmra.mxu0 %v95
  %v271 = vpop.f32.mrf.mxu0
  %v272 = vadd.f32 %v252, %v271
  %273 = vdwg.mxu0
  %274 = vmatpush.msra.mxu0 %v157
  %275 = vmatpush.msra.mxu0 %v153
  %276 = vmatpush.msra.mxu0 %v149
  %277 = vmatpush.msra.mxu0 %v145
  %278 = vmatpush.msra.mxu0 %v141
  %279 = vmatpush.msra.mxu0 %v137
  %280 = vmatpush.msra.mxu0 %v133
  %281 = vmatpush.msra.mxu0 %v129
  %282 = vmatpush.msra.mxu0 %v125
  %283 = vmatpush.msra.mxu0 %v121
  %284 = vmatpush.msra.mxu0 %v117
  %285 = vmatpush.msra.mxu0 %v113
  %286 = vmatpush.msra.mxu0 %v109
  %287 = vmatpush.msra.mxu0 %v105
  %288 = vmatpush.msra.mxu0 %v101
  %289 = vmatpush.msra.mxu0 %v97
  %290 = vmatmul.f32.gmra.mxu0 %v94
  %v291 = vpop.f32.mrf.mxu0
  %v292 = vadd.f32 %v227, %v291
  %293 = vdwg.mxu0
  %294 = vmatpush.msra.mxu0 %v221
  %295 = vmatpush.msra.mxu0 %v217
  %296 = vmatpush.msra.mxu0 %v213
  %297 = vmatpush.msra.mxu0 %v209
  %298 = vmatpush.msra.mxu0 %v205
  %299 = vmatpush.msra.mxu0 %v201
  %300 = vmatpush.msra.mxu0 %v197
  %301 = vmatpush.msra.mxu0 %v193
  %302 = vmatpush.msra.mxu0 %v189
  %303 = vmatpush.msra.mxu0 %v185
  %304 = vmatpush.msra.mxu0 %v181
  %305 = vmatpush.msra.mxu0 %v177
  %306 = vmatpush.msra.mxu0 %v173
  %307 = vmatpush.msra.mxu0 %v169
  %308 = vmatpush.msra.mxu0 %v165
  %309 = vmatpush.msra.mxu0 %v161
  %310 = vmatmul.f32.gmra.mxu0 %v95
  %v311 = vpop.f32.mrf.mxu0
  %v312 = vadd.f32 %v292, %v311
  %313 = vdwg.mxu0
  %314 = vmatpush.msra.mxu0 %v158
  %315 = vmatpush.msra.mxu0 %v154
  %316 = vmatpush.msra.mxu0 %v150
  %317 = vmatpush.msra.mxu0 %v146
  %318 = vmatpush.msra.mxu0 %v142
  %319 = vmatpush.msra.mxu0 %v138
  %320 = vmatpush.msra.mxu0 %v134
  %321 = vmatpush.msra.mxu0 %v130
  %322 = vmatpush.msra.mxu0 %v126
  %323 = vmatpush.msra.mxu0 %v122
  %324 = vmatpush.msra.mxu0 %v118
  %325 = vmatpush.msra.mxu0 %v114
  %326 = vmatpush.msra.mxu0 %v110
  %327 = vmatpush.msra.mxu0 %v106
  %328 = vmatpush.msra.mxu0 %v102
  %329 = vmatpush.msra.mxu0 %v98
  %330 = vmatmul.f32.gmra.mxu0 %v94
  %v331 = vpop.f32.mrf.mxu0
  %v332 = vadd.f32 %v228, %v331
  %333 = vdwg.mxu0
  %334 = vmatpush.msra.mxu0 %v222
  %335 = vmatpush.msra.mxu0 %v218
  %336 = vmatpush.msra.mxu0 %v214
  %337 = vmatpush.msra.mxu0 %v210
  %338 = vmatpush.msra.mxu0 %v206
  %339 = vmatpush.msra.mxu0 %v202
  %340 = vmatpush.msra.mxu0 %v198
  %341 = vmatpush.msra.mxu0 %v194
  %342 = vmatpush.msra.mxu0 %v190
  %343 = vmatpush.msra.mxu0 %v186
  %344 = vmatpush.msra.mxu0 %v182
  %345 = vmatpush.msra.mxu0 %v178
  %346 = vmatpush.msra.mxu0 %v174
  %347 = vmatpush.msra.mxu0 %v170
  %348 = vmatpush.msra.mxu0 %v166
  %349 = vmatpush.msra.mxu0 %v162
  %350 = vmatmul.f32.gmra.mxu0 %v95
  %v351 = vpop.f32.mrf.mxu0
  %v352 = vadd.f32 %v332, %v351
  %353 = vdwg.mxu0
  %354 = vmatpush.msra.mxu0 %v159
  %355 = vmatpush.msra.mxu0 %v155
  %356 = vmatpush.msra.mxu0 %v151
  %357 = vmatpush.msra.mxu0 %v147
  %358 = vmatpush.msra.mxu0 %v143
  %359 = vmatpush.msra.mxu0 %v139
  %360 = vmatpush.msra.mxu0 %v135
  %361 = vmatpush.msra.mxu0 %v131
  %362 = vmatpush.msra.mxu0 %v127
  %363 = vmatpush.msra.mxu0 %v123
  %364 = vmatpush.msra.mxu0 %v119
  %365 = vmatpush.msra.mxu0 %v115
  %366 = vmatpush.msra.mxu0 %v111
  %367 = vmatpush.msra.mxu0 %v107
  %368 = vmatpush.msra.mxu0 %v103
  %369 = vmatpush.msra.mxu0 %v99
  %370 = vmatmul.f32.gmra.mxu0 %v94
  %v371 = vpop.f32.mrf.mxu0
  %v372 = vadd.f32 %v229, %v371
  %373 = vdwg.mxu0
  %374 = vmatpush.msra.mxu0 %v223
  %375 = vmatpush.msra.mxu0 %v219
  %376 = vmatpush.msra.mxu0 %v215
  %377 = vmatpush.msra.mxu0 %v211
  %378 = vmatpush.msra.mxu0 %v207
  %379 = vmatpush.msra.mxu0 %v203
  %380 = vmatpush.msra.mxu0 %v199
  %381 = vmatpush.msra.mxu0 %v195
  %382 = vmatpush.msra.mxu0 %v191
  %383 = vmatpush.msra.mxu0 %v187
  %384 = vmatpush.msra.mxu0 %v183
  %385 = vmatpush.msra.mxu0 %v179
  %386 = vmatpush.msra.mxu0 %v175
  %387 = vmatpush.msra.mxu0 %v171
  %388 = vmatpush.msra.mxu0 %v167
  %389 = vmatpush.msra.mxu0 %v163
  %390 = vmatmul.f32.gmra.mxu0 %v95
  %v391 = vpop.f32.mrf.mxu0
  %v392 = vadd.f32 %v372, %v391
  %393 = vdwg.mxu0
  %s394 = sld [smem:[#allocation2]]
  %v395 = vxor.u32 %v392, 2147483648
  %v396 = vmul.f32 %v395, 1.442695
  %v397 = vpow.pop %v396
  %v398 = vadd.f32 %v397, 1.0
  %v399 = vrcp.pop %v398
  %v400 = vmul.f32 %v398, %v399
  %v401 = vsub.f32 1.0, %v400
  %v402 = vmul.f32 %v399, %v401
  %v403 = vadd.f32 %v399, %v402
  %vm404 = vweird.f32 %v398
  %vm405 = vweird.f32 %v399
  %vm406 = vmor %vm404, %vm405
  %v407 = vsel %vm406, %v399, %v403
  %v408 = vand.u32 2147483647, %v398
  %vm409 = vcmp.eq.f32.partialorder %v408, 8.507059e+37
  %v410 = vand.u32 %v398, 2147483648
  %v411 = vor.u32 1.1754944e-38, %v410
  %v412 = vsel %vm409, %v411, %v407
  %v413 = vmul.f32 1.0, %v412
  %vm414 = vcmask 647680
  %v415 = vsel %vm414, %v272, -inf
  %416 = vmax.xlane.f32.xlu0 %v415
  %v417 = vpop.xlane.xlu0 %416
  %v418 = vsub.f32 %v272, %v417
  %v419 = vmul.f32 %v418, 1.442695
  %v420 = vpow.pop %v419
  %422 = vrot.lane.b32.xlu0 %v420, 64
  %v423 = vpop.permute.xlu0 %422
  %vm425 = vcmask 122880
  %v426 = vsel %vm425, %v423, 0.0
  %427 = vadd.xlane.f32.xlu0 %v426
  %v428 = vpop.xlane.xlu0 %427
  %v429 = vrcp.pop %v428
  %v430 = vmul.f32 %v428, %v429
  %v431 = vsub.f32 1.0, %v430
  %v432 = vmul.f32 %v429, %v431
  %v433 = vadd.f32 %v429, %v432
  %vm434 = vweird.f32 %v428
  %vm435 = vweird.f32 %v429
  %vm436 = vmor %vm434, %vm435
  %v437 = vsel %vm436, %v429, %v433
  %v438 = vand.u32 2147483647, %v428
  %vm439 = vcmp.eq.f32.partialorder %v438, 8.507059e+37
  %v440 = vand.u32 %v428, 2147483648
  %v441 = vor.u32 1.1754944e-38, %v440
  %v442 = vsel %vm439, %v441, %v437
  %v443 = vmul.f32 %v420, %v442
  %445 = vrot.lane.b32.xlu0 %v443, 64
  %v446 = vpop.permute.xlu0 %445
  %448 = vxpose.xlu0.b32.start [1/16] %v446, 128
  %449 = vxpose.xlu0.b32.cont [2/16] 0.0, 128
  %450 = vxpose.xlu0.b32.cont [3/16] 0.0, 128
  %451 = vxpose.xlu0.b32.cont [4/16] 0.0, 128
  %452 = vxpose.xlu0.b32.cont [5/16] 0.0, 128
  %453 = vxpose.xlu0.b32.cont [6/16] 0.0, 128
  %454 = vxpose.xlu0.b32.cont [7/16] 0.0, 128
  %455 = vxpose.xlu0.b32.cont [8/16] 0.0, 128
  %456 = vxpose.xlu0.b32.cont [9/16] 0.0, 128
  %457 = vxpose.xlu0.b32.cont [10/16] 0.0, 128
  %458 = vxpose.xlu0.b32.cont [11/16] 0.0, 128
  %459 = vxpose.xlu0.b32.cont [12/16] 0.0, 128
  %460 = vxpose.xlu0.b32.cont [13/16] 0.0, 128
  %461 = vxpose.xlu0.b32.cont [14/16] 0.0, 128
  %462 = vxpose.xlu0.b32.cont [15/16] 0.0, 128
  %463 = vxpose.xlu0.b32.end [16/16] 0.0, 128
  %v464 = vpop.trf.xlu0
  %v465 = vpop.trf.xlu0
  %v466 = vpop.trf.xlu0
  %v467 = vpop.trf.xlu0
  %v468 = vpop.trf.xlu0
  %v469 = vpop.trf.xlu0
  %v470 = vpop.trf.xlu0
  %v471 = vpop.trf.xlu0
  %v472 = vpop.trf.xlu0
  %v473 = vpop.trf.xlu0
  %v474 = vpop.trf.xlu0
  %v475 = vpop.trf.xlu0
  %v476 = vpop.trf.xlu0
  %v477 = vpop.trf.xlu0
  %v478 = vpop.trf.xlu0
  %v479 = vpop.trf.xlu0
  %481 = vset.pattern.permute.xlu0 0
  %482 = vperm.xlu0 %481, %v464
  %v483 = vpop.permute.xlu0 %482
  %486 = vset.pattern.permute.xlu0 0
  %487 = vperm.xlu0 %486, %v465
  %v488 = vpop.permute.xlu0 %487
  %v490 = vperm.slane %v272, 0
  %v491 = vmul.f32 %v483, %v490
  %v492 = vmul.f32 %v488, %v490
  %v493 = vsel %vm425, %v352, -inf
  %494 = vmax.xlane.f32.xlu0 %v493
  %v495 = vpop.xlane.xlu0 %494
  %v496 = vsub.f32 %v352, %v495
  %v497 = vmul.f32 %v496, 1.442695
  %v498 = vpow.pop %v497
  %v499 = vsel %vm425, %v498, 0.0
  %500 = vadd.xlane.f32.xlu0 %v499
  %v501 = vpop.xlane.xlu0 %500
  %v502 = vrcp.pop %v501
  %v503 = vmul.f32 %v501, %v502
  %v504 = vsub.f32 1.0, %v503
  %v505 = vmul.f32 %v502, %v504
  %v506 = vadd.f32 %v502, %v505
  %vm507 = vweird.f32 %v501
  %vm508 = vweird.f32 %v502
  %vm509 = vmor %vm507, %vm508
  %v510 = vsel %vm509, %v502, %v506
  %v511 = vand.u32 2147483647, %v501
  %vm512 = vcmp.eq.f32.partialorder %v511, 8.507059e+37
  %v513 = vand.u32 %v501, 2147483648
  %v514 = vor.u32 1.1754944e-38, %v513
  %v515 = vsel %vm512, %v514, %v510
  %v516 = vmul.f32 %v498, %v515
  %517 = vxpose.xlu0.b32.start [1/16] %v516, 128
  %518 = vxpose.xlu0.b32.cont [2/16] 0.0, 128
  %519 = vxpose.xlu0.b32.cont [3/16] 0.0, 128
  %520 = vxpose.xlu0.b32.cont [4/16] 0.0, 128
  %521 = vxpose.xlu0.b32.cont [5/16] 0.0, 128
  %522 = vxpose.xlu0.b32.cont [6/16] 0.0, 128
  %523 = vxpose.xlu0.b32.cont [7/16] 0.0, 128
  %524 = vxpose.xlu0.b32.cont [8/16] 0.0, 128
  %525 = vxpose.xlu0.b32.cont [9/16] 0.0, 128
  %526 = vxpose.xlu0.b32.cont [10/16] 0.0, 128
  %527 = vxpose.xlu0.b32.cont [11/16] 0.0, 128
  %528 = vxpose.xlu0.b32.cont [12/16] 0.0, 128
  %529 = vxpose.xlu0.b32.cont [13/16] 0.0, 128
  %530 = vxpose.xlu0.b32.cont [14/16] 0.0, 128
  %531 = vxpose.xlu0.b32.cont [15/16] 0.0, 128
  %532 = vxpose.xlu0.b32.end [16/16] 0.0, 128
  %v533 = vpop.trf.xlu0
  %v534 = vpop.trf.xlu0
  %v535 = vpop.trf.xlu0
  %v536 = vpop.trf.xlu0
  %v537 = vpop.trf.xlu0
  %v538 = vpop.trf.xlu0
  %v539 = vpop.trf.xlu0
  %v540 = vpop.trf.xlu0
  %v541 = vpop.trf.xlu0
  %v542 = vpop.trf.xlu0
  %v543 = vpop.trf.xlu0
  %v544 = vpop.trf.xlu0
  %v545 = vpop.trf.xlu0
  %v546 = vpop.trf.xlu0
  %v547 = vpop.trf.xlu0
  %v548 = vpop.trf.xlu0
  %550 = vset.pattern.permute.xlu0 0
  %551 = vperm.xlu0 %550, %v533
  %v552 = vpop.permute.xlu0 %551
  %555 = vset.pattern.permute.xlu0 0
  %556 = vperm.xlu0 %555, %v534
  %v557 = vpop.permute.xlu0 %556
  %v559 = vperm.slane %v312, 0
  %v560 = vmul.f32 %v552, %v559
  %v561 = vmul.f32 %v557, %v559
  %v562 = vstv %s394
  %v563 = vmul.f32 %v562, %v413
  %v564 = vld [vmem:[%s6] sm:$0xff]
  %v565 = vld [vmem:[%s6 + $0x8] sm:$0xff]
  %v566 = vmul.f32 %v564, %v491
  %v567 = vmul.f32 %v565, %v492
  %570 = vrot.lane.b32.xlu0 %v560, 64
  %v571 = vpop.permute.xlu0 %570
  %572 = vrot.lane.b32.xlu0 %v561, 64
  %v573 = vpop.permute.xlu0 %572
  %v576 = vadd.f32 %v566, %v571
  %v577 = vadd.f32 %v567, %v573
  %s579 = vtos %v563
  %v580 = vstv %s579
  %v582 = vmul.f32 %v580, %v576
  %v583 = vmul.f32 %v580, %v577
  %vm584 = vcmask 64512
  %585 = vst.msk [vmem:[%s7] sm:$0xff] %vm584, %v582
  %586 = vst.msk [vmem:[%s7 + $0x8] sm:$0xff] %vm584, %v583
  %vm587 = vcmask 778880
  %v588 = vsel %vm587, %v272, -inf
  %589 = vmax.xlane.f32.xlu0 %v588
  %v590 = vpop.xlane.xlu0 %589
  %v591 = vsub.f32 %v272, %v590
  %v592 = vmul.f32 %v591, 1.442695
  %v593 = vpow.pop %v592
  %595 = vrot.lane.b32.xlu0 %v593, 48
  %v596 = vpop.permute.xlu0 %595
  %v598 = vsel %vm425, %v596, 0.0
  %599 = vadd.xlane.f32.xlu0 %v598
  %v600 = vpop.xlane.xlu0 %599
  %v601 = vrcp.pop %v600
  %v602 = vmul.f32 %v600, %v601
  %v603 = vsub.f32 1.0, %v602
  %v604 = vmul.f32 %v601, %v603
  %v605 = vadd.f32 %v601, %v604
  %vm606 = vweird.f32 %v600
  %vm607 = vweird.f32 %v601
  %vm608 = vmor %vm606, %vm607
  %v609 = vsel %vm608, %v601, %v605
  %v610 = vand.u32 2147483647, %v600
  %vm611 = vcmp.eq.f32.partialorder %v610, 8.507059e+37
  %v612 = vand.u32 %v600, 2147483648
  %v613 = vor.u32 1.1754944e-38, %v612
  %v614 = vsel %vm611, %v613, %v609
  %v615 = vmul.f32 %v593, %v614
  %617 = vrot.lane.b32.xlu0 %v615, 48
  %v618 = vpop.permute.xlu0 %617
  %620 = vxpose.xlu0.b32.start [1/16] %v618, 128
  %621 = vxpose.xlu0.b32.cont [2/16] 0.0, 128
  %622 = vxpose.xlu0.b32.cont [3/16] 0.0, 128
  %623 = vxpose.xlu0.b32.cont [4/16] 0.0, 128
  %624 = vxpose.xlu0.b32.cont [5/16] 0.0, 128
  %625 = vxpose.xlu0.b32.cont [6/16] 0.0, 128
  %626 = vxpose.xlu0.b32.cont [7/16] 0.0, 128
  %627 = vxpose.xlu0.b32.cont [8/16] 0.0, 128
  %628 = vxpose.xlu0.b32.cont [9/16] 0.0, 128
  %629 = vxpose.xlu0.b32.cont [10/16] 0.0, 128
  %630 = vxpose.xlu0.b32.cont [11/16] 0.0, 128
  %631 = vxpose.xlu0.b32.cont [12/16] 0.0, 128
  %632 = vxpose.xlu0.b32.cont [13/16] 0.0, 128
  %633 = vxpose.xlu0.b32.cont [14/16] 0.0, 128
  %634 = vxpose.xlu0.b32.cont [15/16] 0.0, 128
  %635 = vxpose.xlu0.b32.end [16/16] 0.0, 128
  %v636 = vpop.trf.xlu0
  %v637 = vpop.trf.xlu0
  %v638 = vpop.trf.xlu0
  %v639 = vpop.trf.xlu0
  %v640 = vpop.trf.xlu0
  %v641 = vpop.trf.xlu0
  %v642 = vpop.trf.xlu0
  %v643 = vpop.trf.xlu0
  %v644 = vpop.trf.xlu0
  %v645 = vpop.trf.xlu0
  %v646 = vpop.trf.xlu0
  %v647 = vpop.trf.xlu0
  %v648 = vpop.trf.xlu0
  %v649 = vpop.trf.xlu0
  %v650 = vpop.trf.xlu0
  %v651 = vpop.trf.xlu0
  %653 = vset.pattern.permute.xlu0 0
  %654 = vperm.xlu0 %653, %v636
  %v655 = vpop.permute.xlu0 %654
  %658 = vset.pattern.permute.xlu0 0
  %659 = vperm.xlu0 %658, %v637
  %v660 = vpop.permute.xlu0 %659
  %v662 = vmul.f32 %v655, %v490
  %v663 = vmul.f32 %v660, %v490
  %vm664 = vcmask 254080
  %v665 = vsel %vm664, %v352, -inf
  %666 = vmax.xlane.f32.xlu0 %v665
  %v667 = vpop.xlane.xlu0 %666
  %v668 = vsub.f32 %v352, %v667
  %v669 = vmul.f32 %v668, 1.442695
  %v670 = vpow.pop %v669
  %672 = vrot.lane.b32.xlu0 %v670, 112
  %v673 = vpop.permute.xlu0 %672
  %v675 = vsel %vm425, %v673, 0.0
  %676 = vadd.xlane.f32.xlu0 %v675
  %v677 = vpop.xlane.xlu0 %676
  %v678 = vrcp.pop %v677
  %v679 = vmul.f32 %v677, %v678
  %v680 = vsub.f32 1.0, %v679
  %v681 = vmul.f32 %v678, %v680
  %v682 = vadd.f32 %v678, %v681
  %vm683 = vweird.f32 %v677
  %vm684 = vweird.f32 %v678
  %vm685 = vmor %vm683, %vm684
  %v686 = vsel %vm685, %v678, %v682
  %v687 = vand.u32 2147483647, %v677
  %vm688 = vcmp.eq.f32.partialorder %v687, 8.507059e+37
  %v689 = vand.u32 %v677, 2147483648
  %v690 = vor.u32 1.1754944e-38, %v689
  %v691 = vsel %vm688, %v690, %v686
  %v692 = vmul.f32 %v670, %v691
  %694 = vrot.lane.b32.xlu0 %v692, 112
  %v695 = vpop.permute.xlu0 %694
  %697 = vxpose.xlu0.b32.start [1/16] %v695, 128
  %698 = vxpose.xlu0.b32.cont [2/16] 0.0, 128
  %699 = vxpose.xlu0.b32.cont [3/16] 0.0, 128
  %700 = vxpose.xlu0.b32.cont [4/16] 0.0, 128
  %701 = vxpose.xlu0.b32.cont [5/16] 0.0, 128
  %702 = vxpose.xlu0.b32.cont [6/16] 0.0, 128
  %703 = vxpose.xlu0.b32.cont [7/16] 0.0, 128
  %704 = vxpose.xlu0.b32.cont [8/16] 0.0, 128
  %705 = vxpose.xlu0.b32.cont [9/16] 0.0, 128
  %706 = vxpose.xlu0.b32.cont [10/16] 0.0, 128
  %707 = vxpose.xlu0.b32.cont [11/16] 0.0, 128
  %708 = vxpose.xlu0.b32.cont [12/16] 0.0, 128
  %709 = vxpose.xlu0.b32.cont [13/16] 0.0, 128
  %710 = vxpose.xlu0.b32.cont [14/16] 0.0, 128
  %711 = vxpose.xlu0.b32.cont [15/16] 0.0, 128
  %712 = vxpose.xlu0.b32.end [16/16] 0.0, 128
  %v713 = vpop.trf.xlu0
  %v714 = vpop.trf.xlu0
  %v715 = vpop.trf.xlu0
  %v716 = vpop.trf.xlu0
  %v717 = vpop.trf.xlu0
  %v718 = vpop.trf.xlu0
  %v719 = vpop.trf.xlu0
  %v720 = vpop.trf.xlu0
  %v721 = vpop.trf.xlu0
  %v722 = vpop.trf.xlu0
  %v723 = vpop.trf.xlu0
  %v724 = vpop.trf.xlu0
  %v725 = vpop.trf.xlu0
  %v726 = vpop.trf.xlu0
  %v727 = vpop.trf.xlu0
  %v728 = vpop.trf.xlu0
  %730 = vset.pattern.permute.xlu0 0
  %731 = vperm.xlu0 %730, %v713
  %v732 = vpop.permute.xlu0 %731
  %735 = vset.pattern.permute.xlu0 0
  %736 = vperm.xlu0 %735, %v714
  %v737 = vpop.permute.xlu0 %736
  %v739 = vmul.f32 %v732, %v559
  %v740 = vmul.f32 %v737, %v559
  %s741 = scalar_lea.vmem %s6, 16
  %v742 = vld [vmem:[%s741] sm:$0xff]
  %v743 = vld [vmem:[%s741 + $0x8] sm:$0xff]
  %746 = vrot.lane.b32.xlu0 %v662, 120
  %v747 = vpop.permute.xlu0 %746
  %748 = vrot.lane.b32.xlu0 %v663, 120
  %v749 = vpop.permute.xlu0 %748
  %v752 = vmul.f32 %v742, %v747
  %v753 = vmul.f32 %v743, %v749
  %756 = vrot.lane.b32.xlu0 %v739, 56
  %v757 = vpop.permute.xlu0 %756
  %758 = vrot.lane.b32.xlu0 %v740, 56
  %v759 = vpop.permute.xlu0 %758
  %v762 = vadd.f32 %v752, %v757
  %v763 = vadd.f32 %v753, %v759
  %764 = vrot.lane.b32.xlu0 %v563, 127
  %v765 = vpop.permute.xlu0 %764
  %s766 = vtos %v765
  %v767 = vstv %s766
  %v769 = vmul.f32 %v767, %v762
  %v770 = vmul.f32 %v767, %v763
  %s771 = scalar_lea.vmem %s7, 16
  %772 = vst.msk [vmem:[%s771] sm:$0xff] %vm584, %v769
  %773 = vst.msk [vmem:[%s771 + $0x8] sm:$0xff] %vm584, %v770
  %vm774 = vcmask 910080
  %v775 = vsel %vm774, %v272, -inf
  %776 = vmax.xlane.f32.xlu0 %v775
  %v777 = vpop.xlane.xlu0 %776
  %v778 = vsub.f32 %v272, %v777
  %v779 = vmul.f32 %v778, 1.442695
  %v780 = vpow.pop %v779
  %782 = vrot.lane.b32.xlu0 %v780, 32
  %v783 = vpop.permute.xlu0 %782
  %v785 = vsel %vm425, %v783, 0.0
  %786 = vadd.xlane.f32.xlu0 %v785
  %v787 = vpop.xlane.xlu0 %786
  %v788 = vrcp.pop %v787
  %v789 = vmul.f32 %v787, %v788
  %v790 = vsub.f32 1.0, %v789
  %v791 = vmul.f32 %v788, %v790
  %v792 = vadd.f32 %v788, %v791
  %vm793 = vweird.f32 %v787
  %vm794 = vweird.f32 %v788
  %vm795 = vmor %vm793, %vm794
  %v796 = vsel %vm795, %v788, %v792
  %v797 = vand.u32 2147483647, %v787
  %vm798 = vcmp.eq.f32.partialorder %v797, 8.507059e+37
  %v799 = vand.u32 %v787, 2147483648
  %v800 = vor.u32 1.1754944e-38, %v799
  %v801 = vsel %vm798, %v800, %v796
  %v802 = vmul.f32 %v780, %v801
  %804 = vrot.lane.b32.xlu0 %v802, 32
  %v805 = vpop.permute.xlu0 %804
  %807 = vxpose.xlu0.b32.start [1/16] %v805, 128
  %808 = vxpose.xlu0.b32.cont [2/16] 0.0, 128
  %809 = vxpose.xlu0.b32.cont [3/16] 0.0, 128
  %810 = vxpose.xlu0.b32.cont [4/16] 0.0, 128
  %811 = vxpose.xlu0.b32.cont [5/16] 0.0, 128
  %812 = vxpose.xlu0.b32.cont [6/16] 0.0, 128
  %813 = vxpose.xlu0.b32.cont [7/16] 0.0, 128
  %814 = vxpose.xlu0.b32.cont [8/16] 0.0, 128
  %815 = vxpose.xlu0.b32.cont [9/16] 0.0, 128
  %816 = vxpose.xlu0.b32.cont [10/16] 0.0, 128
  %817 = vxpose.xlu0.b32.cont [11/16] 0.0, 128
  %818 = vxpose.xlu0.b32.cont [12/16] 0.0, 128
  %819 = vxpose.xlu0.b32.cont [13/16] 0.0, 128
  %820 = vxpose.xlu0.b32.cont [14/16] 0.0, 128
  %821 = vxpose.xlu0.b32.cont [15/16] 0.0, 128
  %822 = vxpose.xlu0.b32.end [16/16] 0.0, 128
  %v823 = vpop.trf.xlu0
  %v824 = vpop.trf.xlu0
  %v825 = vpop.trf.xlu0
  %v826 = vpop.trf.xlu0
  %v827 = vpop.trf.xlu0
  %v828 = vpop.trf.xlu0
  %v829 = vpop.trf.xlu0
  %v830 = vpop.trf.xlu0
  %v831 = vpop.trf.xlu0
  %v832 = vpop.trf.xlu0
  %v833 = vpop.trf.xlu0
  %v834 = vpop.trf.xlu0
  %v835 = vpop.trf.xlu0
  %v836 = vpop.trf.xlu0
  %v837 = vpop.trf.xlu0
  %v838 = vpop.trf.xlu0
  %840 = vset.pattern.permute.xlu0 0
  %841 = vperm.xlu0 %840, %v823
  %v842 = vpop.permute.xlu0 %841
  %845 = vset.pattern.permute.xlu0 0
  %846 = vperm.xlu0 %845, %v824
  %v847 = vpop.permute.xlu0 %846
  %v849 = vmul.f32 %v842, %v490
  %v850 = vmul.f32 %v847, %v490
  %vm851 = vcmask 385280
  %v852 = vsel %vm851, %v352, -inf
  %853 = vmax.xlane.f32.xlu0 %v852
  %v854 = vpop.xlane.xlu0 %853
  %v855 = vsub.f32 %v352, %v854
  %v856 = vmul.f32 %v855, 1.442695
  %v857 = vpow.pop %v856
  %859 = vrot.lane.b32.xlu0 %v857, 96
  %v860 = vpop.permute.xlu0 %859
  %v862 = vsel %vm425, %v860, 0.0
  %863 = vadd.xlane.f32.xlu0 %v862
  %v864 = vpop.xlane.xlu0 %863
  %v865 = vrcp.pop %v864
  %v866 = vmul.f32 %v864, %v865
  %v867 = vsub.f32 1.0, %v866
  %v868 = vmul.f32 %v865, %v867
  %v869 = vadd.f32 %v865, %v868
  %vm870 = vweird.f32 %v864
  %vm871 = vweird.f32 %v865
  %vm872 = vmor %vm870, %vm871
  %v873 = vsel %vm872, %v865, %v869
  %v874 = vand.u32 2147483647, %v864
  %vm875 = vcmp.eq.f32.partialorder %v874, 8.507059e+37
  %v876 = vand.u32 %v864, 2147483648
  %v877 = vor.u32 1.1754944e-38, %v876
  %v878 = vsel %vm875, %v877, %v873
  %v879 = vmul.f32 %v857, %v878
  %881 = vrot.lane.b32.xlu0 %v879, 96
  %v882 = vpop.permute.xlu0 %881
  %884 = vxpose.xlu0.b32.start [1/16] %v882, 128
  %885 = vxpose.xlu0.b32.cont [2/16] 0.0, 128
  %886 = vxpose.xlu0.b32.cont [3/16] 0.0, 128
  %887 = vxpose.xlu0.b32.cont [4/16] 0.0, 128
  %888 = vxpose.xlu0.b32.cont [5/16] 0.0, 128
  %889 = vxpose.xlu0.b32.cont [6/16] 0.0, 128
  %890 = vxpose.xlu0.b32.cont [7/16] 0.0, 128
  %891 = vxpose.xlu0.b32.cont [8/16] 0.0, 128
  %892 = vxpose.xlu0.b32.cont [9/16] 0.0, 128
  %893 = vxpose.xlu0.b32.cont [10/16] 0.0, 128
  %894 = vxpose.xlu0.b32.cont [11/16] 0.0, 128
  %895 = vxpose.xlu0.b32.cont [12/16] 0.0, 128
  %896 = vxpose.xlu0.b32.cont [13/16] 0.0, 128
  %897 = vxpose.xlu0.b32.cont [14/16] 0.0, 128
  %898 = vxpose.xlu0.b32.cont [15/16] 0.0, 128
  %899 = vxpose.xlu0.b32.end [16/16] 0.0, 128
  %v900 = vpop.trf.xlu0
  %v901 = vpop.trf.xlu0
  %v902 = vpop.trf.xlu0
  %v903 = vpop.trf.xlu0
  %v904 = vpop.trf.xlu0
  %v905 = vpop.trf.xlu0
  %v906 = vpop.trf.xlu0
  %v907 = vpop.trf.xlu0
  %v908 = vpop.trf.xlu0
  %v909 = vpop.trf.xlu0
  %v910 = vpop.trf.xlu0
  %v911 = vpop.trf.xlu0
  %v912 = vpop.trf.xlu0
  %v913 = vpop.trf.xlu0
  %v914 = vpop.trf.xlu0
  %v915 = vpop.trf.xlu0
  %917 = vset.pattern.permute.xlu0 0
  %918 = vperm.xlu0 %917, %v900
  %v919 = vpop.permute.xlu0 %918
  %922 = vset.pattern.permute.xlu0 0
  %923 = vperm.xlu0 %922, %v901
  %v924 = vpop.permute.xlu0 %923
  %v926 = vmul.f32 %v919, %v559
  %v927 = vmul.f32 %v924, %v559
  %s928 = scalar_lea.vmem %s6, 32
  %v929 = vld [vmem:[%s928] sm:$0xff]
  %v930 = vld [vmem:[%s928 + $0x8] sm:$0xff]
  %933 = vrot.lane.b32.xlu0 %v849, 112
  %v934 = vpop.permute.xlu0 %933
  %935 = vrot.lane.b32.xlu0 %v850, 112
  %v936 = vpop.permute.xlu0 %935
  %v939 = vmul.f32 %v929, %v934
  %v940 = vmul.f32 %v930, %v936
  %943 = vrot.lane.b32.xlu0 %v926, 48
  %v944 = vpop.permute.xlu0 %943
  %945 = vrot.lane.b32.xlu0 %v927, 48
  %v946 = vpop.permute.xlu0 %945
  %v949 = vadd.f32 %v939, %v944
  %v950 = vadd.f32 %v940, %v946
  %951 = vrot.lane.b32.xlu0 %v563, 126
  %v952 = vpop.permute.xlu0 %951
  %s953 = vtos %v952
  %v954 = vstv %s953
  %v956 = vmul.f32 %v954, %v949
  %v957 = vmul.f32 %v954, %v950
  %s958 = scalar_lea.vmem %s7, 32
  %959 = vst.msk [vmem:[%s958] sm:$0xff] %vm584, %v956
  %960 = vst.msk [vmem:[%s958 + $0x8] sm:$0xff] %vm584, %v957
  %vm961 = vcmask 1041280
  %v962 = vsel %vm961, %v272, -inf
  %963 = vmax.xlane.f32.xlu0 %v962
  %v964 = vpop.xlane.xlu0 %963
  %v965 = vsub.f32 %v272, %v964
  %v966 = vmul.f32 %v965, 1.442695
  %v967 = vpow.pop %v966
  %969 = vrot.lane.b32.xlu0 %v967, 16
  %v970 = vpop.permute.xlu0 %969
  %v972 = vsel %vm425, %v970, 0.0
  %973 = vadd.xlane.f32.xlu0 %v972
  %v974 = vpop.xlane.xlu0 %973
  %v975 = vrcp.pop %v974
  %v976 = vmul.f32 %v974, %v975
  %v977 = vsub.f32 1.0, %v976
  %v978 = vmul.f32 %v975, %v977
  %v979 = vadd.f32 %v975, %v978
  %vm980 = vweird.f32 %v974
  %vm981 = vweird.f32 %v975
  %vm982 = vmor %vm980, %vm981
  %v983 = vsel %vm982, %v975, %v979
  %v984 = vand.u32 2147483647, %v974
  %vm985 = vcmp.eq.f32.partialorder %v984, 8.507059e+37
  %v986 = vand.u32 %v974, 2147483648
  %v987 = vor.u32 1.1754944e-38, %v986
  %v988 = vsel %vm985, %v987, %v983
  %v989 = vmul.f32 %v967, %v988
  %991 = vrot.lane.b32.xlu0 %v989, 16
  %v992 = vpop.permute.xlu0 %991
  %994 = vxpose.xlu0.b32.start [1/16] %v992, 128
  %995 = vxpose.xlu0.b32.cont [2/16] 0.0, 128
  %996 = vxpose.xlu0.b32.cont [3/16] 0.0, 128
  %997 = vxpose.xlu0.b32.cont [4/16] 0.0, 128
  %998 = vxpose.xlu0.b32.cont [5/16] 0.0, 128
  %999 = vxpose.xlu0.b32.cont [6/16] 0.0, 128
  %1000 = vxpose.xlu0.b32.cont [7/16] 0.0, 128
  %1001 = vxpose.xlu0.b32.cont [8/16] 0.0, 128
  %1002 = vxpose.xlu0.b32.cont [9/16] 0.0, 128
  %1003 = vxpose.xlu0.b32.cont [10/16] 0.0, 128
  %1004 = vxpose.xlu0.b32.cont [11/16] 0.0, 128
  %1005 = vxpose.xlu0.b32.cont [12/16] 0.0, 128
  %1006 = vxpose.xlu0.b32.cont [13/16] 0.0, 128
  %1007 = vxpose.xlu0.b32.cont [14/16] 0.0, 128
  %1008 = vxpose.xlu0.b32.cont [15/16] 0.0, 128
  %1009 = vxpose.xlu0.b32.end [16/16] 0.0, 128
  %v1010 = vpop.trf.xlu0
  %v1011 = vpop.trf.xlu0
  %v1012 = vpop.trf.xlu0
  %v1013 = vpop.trf.xlu0
  %v1014 = vpop.trf.xlu0
  %v1015 = vpop.trf.xlu0
  %v1016 = vpop.trf.xlu0
  %v1017 = vpop.trf.xlu0
  %v1018 = vpop.trf.xlu0
  %v1019 = vpop.trf.xlu0
  %v1020 = vpop.trf.xlu0
  %v1021 = vpop.trf.xlu0
  %v1022 = vpop.trf.xlu0
  %v1023 = vpop.trf.xlu0
  %v1024 = vpop.trf.xlu0
  %v1025 = vpop.trf.xlu0
  %1027 = vset.pattern.permute.xlu0 0
  %1028 = vperm.xlu0 %1027, %v1010
  %v1029 = vpop.permute.xlu0 %1028
  %1032 = vset.pattern.permute.xlu0 0
  %1033 = vperm.xlu0 %1032, %v1011
  %v1034 = vpop.permute.xlu0 %1033
  %v1036 = vmul.f32 %v1029, %v490
  %v1037 = vmul.f32 %v1034, %v490
  %vm1038 = vcmask 516480
  %v1039 = vsel %vm1038, %v352, -inf
  %1040 = vmax.xlane.f32.xlu0 %v1039
  %v1041 = vpop.xlane.xlu0 %1040
  %v1042 = vsub.f32 %v352, %v1041
  %v1043 = vmul.f32 %v1042, 1.442695
  %v1044 = vpow.pop %v1043
  %1046 = vrot.lane.b32.xlu0 %v1044, 80
  %v1047 = vpop.permute.xlu0 %1046
  %v1049 = vsel %vm425, %v1047, 0.0
  %1050 = vadd.xlane.f32.xlu0 %v1049
  %v1051 = vpop.xlane.xlu0 %1050
  %v1052 = vrcp.pop %v1051
  %v1053 = vmul.f32 %v1051, %v1052
  %v1054 = vsub.f32 1.0, %v1053
  %v1055 = vmul.f32 %v1052, %v1054
  %v1056 = vadd.f32 %v1052, %v1055
  %vm1057 = vweird.f32 %v1051
  %vm1058 = vweird.f32 %v1052
  %vm1059 = vmor %vm1057, %vm1058
  %v1060 = vsel %vm1059, %v1052, %v1056
  %v1061 = vand.u32 2147483647, %v1051
  %vm1062 = vcmp.eq.f32.partialorder %v1061, 8.507059e+37
  %v1063 = vand.u32 %v1051, 2147483648
  %v1064 = vor.u32 1.1754944e-38, %v1063
  %v1065 = vsel %vm1062, %v1064, %v1060
  %v1066 = vmul.f32 %v1044, %v1065
  %1068 = vrot.lane.b32.xlu0 %v1066, 80
  %v1069 = vpop.permute.xlu0 %1068
  %1071 = vxpose.xlu0.b32.start [1/16] %v1069, 128
  %1072 = vxpose.xlu0.b32.cont [2/16] 0.0, 128
  %1073 = vxpose.xlu0.b32.cont [3/16] 0.0, 128
  %1074 = vxpose.xlu0.b32.cont [4/16] 0.0, 128
  %1075 = vxpose.xlu0.b32.cont [5/16] 0.0, 128
  %1076 = vxpose.xlu0.b32.cont [6/16] 0.0, 128
  %1077 = vxpose.xlu0.b32.cont [7/16] 0.0, 128
  %1078 = vxpose.xlu0.b32.cont [8/16] 0.0, 128
  %1079 = vxpose.xlu0.b32.cont [9/16] 0.0, 128
  %1080 = vxpose.xlu0.b32.cont [10/16] 0.0, 128
  %1081 = vxpose.xlu0.b32.cont [11/16] 0.0, 128
  %1082 = vxpose.xlu0.b32.cont [12/16] 0.0, 128
  %1083 = vxpose.xlu0.b32.cont [13/16] 0.0, 128
  %1084 = vxpose.xlu0.b32.cont [14/16] 0.0, 128
  %1085 = vxpose.xlu0.b32.cont [15/16] 0.0, 128
  %1086 = vxpose.xlu0.b32.end [16/16] 0.0, 128
  %v1087 = vpop.trf.xlu0
  %v1088 = vpop.trf.xlu0
  %v1089 = vpop.trf.xlu0
  %v1090 = vpop.trf.xlu0
  %v1091 = vpop.trf.xlu0
  %v1092 = vpop.trf.xlu0
  %v1093 = vpop.trf.xlu0
  %v1094 = vpop.trf.xlu0
  %v1095 = vpop.trf.xlu0
  %v1096 = vpop.trf.xlu0
  %v1097 = vpop.trf.xlu0
  %v1098 = vpop.trf.xlu0
  %v1099 = vpop.trf.xlu0
  %v1100 = vpop.trf.xlu0
  %v1101 = vpop.trf.xlu0
  %v1102 = vpop.trf.xlu0
  %1104 = vset.pattern.permute.xlu0 0
  %1105 = vperm.xlu0 %1104, %v1087
  %v1106 = vpop.permute.xlu0 %1105
  %1109 = vset.pattern.permute.xlu0 0
  %1110 = vperm.xlu0 %1109, %v1088
  %v1111 = vpop.permute.xlu0 %1110
  %v1113 = vmul.f32 %v1106, %v559
  %v1114 = vmul.f32 %v1111, %v559
  %s1115 = scalar_lea.vmem %s6, 48
  %v1116 = vld [vmem:[%s1115] sm:$0xff]
  %v1117 = vld [vmem:[%s1115 + $0x8] sm:$0xff]
  %1120 = vrot.lane.b32.xlu0 %v1036, 104
  %v1121 = vpop.permute.xlu0 %1120
  %1122 = vrot.lane.b32.xlu0 %v1037, 104
  %v1123 = vpop.permute.xlu0 %1122
  %v1126 = vmul.f32 %v1116, %v1121
  %v1127 = vmul.f32 %v1117, %v1123
  %1130 = vrot.lane.b32.xlu0 %v1113, 40
  %v1131 = vpop.permute.xlu0 %1130
  %1132 = vrot.lane.b32.xlu0 %v1114, 40
  %v1133 = vpop.permute.xlu0 %1132
  %v1136 = vadd.f32 %v1126, %v1131
  %v1137 = vadd.f32 %v1127, %v1133
  %1138 = vrot.lane.b32.xlu0 %v563, 125
  %v1139 = vpop.permute.xlu0 %1138
  %s1140 = vtos %v1139
  %v1141 = vstv %s1140
  %v1143 = vmul.f32 %v1141, %v1136
  %v1144 = vmul.f32 %v1141, %v1137
  %s1145 = scalar_lea.vmem %s7, 48
  %1146 = vst.msk [vmem:[%s1145] sm:$0xff] %vm584, %v1143
  %1147 = vst.msk [vmem:[%s1145 + $0x8] sm:$0xff] %vm584, %v1144
  %v1148 = vsel %vm425, %v312, -inf
  %1149 = vmax.xlane.f32.xlu0 %v1148
  %v1150 = vpop.xlane.xlu0 %1149
  %v1151 = vsub.f32 %v312, %v1150
  %v1152 = vmul.f32 %v1151, 1.442695
  %v1153 = vpow.pop %v1152
  %v1154 = vsel %vm425, %v1153, 0.0
  %1155 = vadd.xlane.f32.xlu0 %v1154
  %v1156 = vpop.xlane.xlu0 %1155
  %v1157 = vrcp.pop %v1156
  %v1158 = vmul.f32 %v1156, %v1157
  %v1159 = vsub.f32 1.0, %v1158
  %v1160 = vmul.f32 %v1157, %v1159
  %v1161 = vadd.f32 %v1157, %v1160
  %vm1162 = vweird.f32 %v1156
  %vm1163 = vweird.f32 %v1157
  %vm1164 = vmor %vm1162, %vm1163
  %v1165 = vsel %vm1164, %v1157, %v1161
  %v1166 = vand.u32 2147483647, %v1156
  %vm1167 = vcmp.eq.f32.partialorder %v1166, 8.507059e+37
  %v1168 = vand.u32 %v1156, 2147483648
  %v1169 = vor.u32 1.1754944e-38, %v1168
  %v1170 = vsel %vm1167, %v1169, %v1165
  %v1171 = vmul.f32 %v1153, %v1170
  %1172 = vxpose.xlu0.b32.start [1/16] %v1171, 128
  %1173 = vxpose.xlu0.b32.cont [2/16] 0.0, 128
  %1174 = vxpose.xlu0.b32.cont [3/16] 0.0, 128
  %1175 = vxpose.xlu0.b32.cont [4/16] 0.0, 128
  %1176 = vxpose.xlu0.b32.cont [5/16] 0.0, 128
  %1177 = vxpose.xlu0.b32.cont [6/16] 0.0, 128
  %1178 = vxpose.xlu0.b32.cont [7/16] 0.0, 128
  %1179 = vxpose.xlu0.b32.cont [8/16] 0.0, 128
  %1180 = vxpose.xlu0.b32.cont [9/16] 0.0, 128
  %1181 = vxpose.xlu0.b32.cont [10/16] 0.0, 128
  %1182 = vxpose.xlu0.b32.cont [11/16] 0.0, 128
  %1183 = vxpose.xlu0.b32.cont [12/16] 0.0, 128
  %1184 = vxpose.xlu0.b32.cont [13/16] 0.0, 128
  %1185 = vxpose.xlu0.b32.cont [14/16] 0.0, 128
  %1186 = vxpose.xlu0.b32.cont [15/16] 0.0, 128
  %1187 = vxpose.xlu0.b32.end [16/16] 0.0, 128
  %v1188 = vpop.trf.xlu0
  %v1189 = vpop.trf.xlu0
  %v1190 = vpop.trf.xlu0
  %v1191 = vpop.trf.xlu0
  %v1192 = vpop.trf.xlu0
  %v1193 = vpop.trf.xlu0
  %v1194 = vpop.trf.xlu0
  %v1195 = vpop.trf.xlu0
  %v1196 = vpop.trf.xlu0
  %v1197 = vpop.trf.xlu0
  %v1198 = vpop.trf.xlu0
  %v1199 = vpop.trf.xlu0
  %v1200 = vpop.trf.xlu0
  %v1201 = vpop.trf.xlu0
  %v1202 = vpop.trf.xlu0
  %v1203 = vpop.trf.xlu0
  %1205 = vset.pattern.permute.xlu0 0
  %1206 = vperm.xlu0 %1205, %v1188
  %v1207 = vpop.permute.xlu0 %1206
  %1210 = vset.pattern.permute.xlu0 0
  %1211 = vperm.xlu0 %1210, %v1189
  %v1212 = vpop.permute.xlu0 %1211
  %v1214 = vmul.f32 %v1207, %v490
  %v1215 = vmul.f32 %v1212, %v490
  %v1216 = vsel %vm414, %v352, -inf
  %1217 = vmax.xlane.f32.xlu0 %v1216
  %v1218 = vpop.xlane.xlu0 %1217
  %v1219 = vsub.f32 %v352, %v1218
  %v1220 = vmul.f32 %v1219, 1.442695
  %v1221 = vpow.pop %v1220
  %1223 = vrot.lane.b32.xlu0 %v1221, 64
  %v1224 = vpop.permute.xlu0 %1223
  %v1226 = vsel %vm425, %v1224, 0.0
  %1227 = vadd.xlane.f32.xlu0 %v1226
  %v1228 = vpop.xlane.xlu0 %1227
  %v1229 = vrcp.pop %v1228
  %v1230 = vmul.f32 %v1228, %v1229
  %v1231 = vsub.f32 1.0, %v1230
  %v1232 = vmul.f32 %v1229, %v1231
  %v1233 = vadd.f32 %v1229, %v1232
  %vm1234 = vweird.f32 %v1228
  %vm1235 = vweird.f32 %v1229
  %vm1236 = vmor %vm1234, %vm1235
  %v1237 = vsel %vm1236, %v1229, %v1233
  %v1238 = vand.u32 2147483647, %v1228
  %vm1239 = vcmp.eq.f32.partialorder %v1238, 8.507059e+37
  %v1240 = vand.u32 %v1228, 2147483648
  %v1241 = vor.u32 1.1754944e-38, %v1240
  %v1242 = vsel %vm1239, %v1241, %v1237
  %v1243 = vmul.f32 %v1221, %v1242
  %1245 = vrot.lane.b32.xlu0 %v1243, 64
  %v1246 = vpop.permute.xlu0 %1245
  %1248 = vxpose.xlu0.b32.start [1/16] %v1246, 128
  %1249 = vxpose.xlu0.b32.cont [2/16] 0.0, 128
  %1250 = vxpose.xlu0.b32.cont [3/16] 0.0, 128
  %1251 = vxpose.xlu0.b32.cont [4/16] 0.0, 128
  %1252 = vxpose.xlu0.b32.cont [5/16] 0.0, 128
  %1253 = vxpose.xlu0.b32.cont [6/16] 0.0, 128
  %1254 = vxpose.xlu0.b32.cont [7/16] 0.0, 128
  %1255 = vxpose.xlu0.b32.cont [8/16] 0.0, 128
  %1256 = vxpose.xlu0.b32.cont [9/16] 0.0, 128
  %1257 = vxpose.xlu0.b32.cont [10/16] 0.0, 128
  %1258 = vxpose.xlu0.b32.cont [11/16] 0.0, 128
  %1259 = vxpose.xlu0.b32.cont [12/16] 0.0, 128
  %1260 = vxpose.xlu0.b32.cont [13/16] 0.0, 128
  %1261 = vxpose.xlu0.b32.cont [14/16] 0.0, 128
  %1262 = vxpose.xlu0.b32.cont [15/16] 0.0, 128
  %1263 = vxpose.xlu0.b32.end [16/16] 0.0, 128
  %v1264 = vpop.trf.xlu0
  %v1265 = vpop.trf.xlu0
  %v1266 = vpop.trf.xlu0
  %v1267 = vpop.trf.xlu0
  %v1268 = vpop.trf.xlu0
  %v1269 = vpop.trf.xlu0
  %v1270 = vpop.trf.xlu0
  %v1271 = vpop.trf.xlu0
  %v1272 = vpop.trf.xlu0
  %v1273 = vpop.trf.xlu0
  %v1274 = vpop.trf.xlu0
  %v1275 = vpop.trf.xlu0
  %v1276 = vpop.trf.xlu0
  %v1277 = vpop.trf.xlu0
  %v1278 = vpop.trf.xlu0
  %v1279 = vpop.trf.xlu0
  %1281 = vset.pattern.permute.xlu0 0
  %1282 = vperm.xlu0 %1281, %v1264
  %v1283 = vpop.permute.xlu0 %1282
  %1286 = vset.pattern.permute.xlu0 0
  %1287 = vperm.xlu0 %1286, %v1265
  %v1288 = vpop.permute.xlu0 %1287
  %v1290 = vmul.f32 %v1283, %v559
  %v1291 = vmul.f32 %v1288, %v559
  %s1292 = scalar_lea.vmem %s6, 64
  %v1293 = vld [vmem:[%s1292] sm:$0xff]
  %v1294 = vld [vmem:[%s1292 + $0x8] sm:$0xff]
  %1297 = vrot.lane.b32.xlu0 %v1214, 96
  %v1298 = vpop.permute.xlu0 %1297
  %1299 = vrot.lane.b32.xlu0 %v1215, 96
  %v1300 = vpop.permute.xlu0 %1299
  %v1303 = vmul.f32 %v1293, %v1298
  %v1304 = vmul.f32 %v1294, %v1300
  %1307 = vrot.lane.b32.xlu0 %v1290, 32
  %v1308 = vpop.permute.xlu0 %1307
  %1309 = vrot.lane.b32.xlu0 %v1291, 32
  %v1310 = vpop.permute.xlu0 %1309
  %v1313 = vadd.f32 %v1303, %v1308
  %v1314 = vadd.f32 %v1304, %v1310
  %1315 = vrot.lane.b32.xlu0 %v563, 124
  %v1316 = vpop.permute.xlu0 %1315
  %s1317 = vtos %v1316
  %v1318 = vstv %s1317
  %v1320 = vmul.f32 %v1318, %v1313
  %v1321 = vmul.f32 %v1318, %v1314
  %s1322 = scalar_lea.vmem %s7, 64
  %1323 = vst.msk [vmem:[%s1322] sm:$0xff] %vm584, %v1320
  %1324 = vst.msk [vmem:[%s1322 + $0x8] sm:$0xff] %vm584, %v1321
  %v1325 = vsel %vm664, %v312, -inf
  %1326 = vmax.xlane.f32.xlu0 %v1325
  %v1327 = vpop.xlane.xlu0 %1326
  %v1328 = vsub.f32 %v312, %v1327
  %v1329 = vmul.f32 %v1328, 1.442695
  %v1330 = vpow.pop %v1329
  %1332 = vrot.lane.b32.xlu0 %v1330, 112
  %v1333 = vpop.permute.xlu0 %1332
  %v1335 = vsel %vm425, %v1333, 0.0
  %1336 = vadd.xlane.f32.xlu0 %v1335
  %v1337 = vpop.xlane.xlu0 %1336
  %v1338 = vrcp.pop %v1337
  %v1339 = vmul.f32 %v1337, %v1338
  %v1340 = vsub.f32 1.0, %v1339
  %v1341 = vmul.f32 %v1338, %v1340
  %v1342 = vadd.f32 %v1338, %v1341
  %vm1343 = vweird.f32 %v1337
  %vm1344 = vweird.f32 %v1338
  %vm1345 = vmor %vm1343, %vm1344
  %v1346 = vsel %vm1345, %v1338, %v1342
  %v1347 = vand.u32 2147483647, %v1337
  %vm1348 = vcmp.eq.f32.partialorder %v1347, 8.507059e+37
  %v1349 = vand.u32 %v1337, 2147483648
  %v1350 = vor.u32 1.1754944e-38, %v1349
  %v1351 = vsel %vm1348, %v1350, %v1346
  %v1352 = vmul.f32 %v1330, %v1351
  %1354 = vrot.lane.b32.xlu0 %v1352, 112
  %v1355 = vpop.permute.xlu0 %1354
  %1357 = vxpose.xlu0.b32.start [1/16] %v1355, 128
  %1358 = vxpose.xlu0.b32.cont [2/16] 0.0, 128
  %1359 = vxpose.xlu0.b32.cont [3/16] 0.0, 128
  %1360 = vxpose.xlu0.b32.cont [4/16] 0.0, 128
  %1361 = vxpose.xlu0.b32.cont [5/16] 0.0, 128
  %1362 = vxpose.xlu0.b32.cont [6/16] 0.0, 128
  %1363 = vxpose.xlu0.b32.cont [7/16] 0.0, 128
  %1364 = vxpose.xlu0.b32.cont [8/16] 0.0, 128
  %1365 = vxpose.xlu0.b32.cont [9/16] 0.0, 128
  %1366 = vxpose.xlu0.b32.cont [10/16] 0.0, 128
  %1367 = vxpose.xlu0.b32.cont [11/16] 0.0, 128
  %1368 = vxpose.xlu0.b32.cont [12/16] 0.0, 128
  %1369 = vxpose.xlu0.b32.cont [13/16] 0.0, 128
  %1370 = vxpose.xlu0.b32.cont [14/16] 0.0, 128
  %1371 = vxpose.xlu0.b32.cont [15/16] 0.0, 128
  %1372 = vxpose.xlu0.b32.end [16/16] 0.0, 128
  %v1373 = vpop.trf.xlu0
  %v1374 = vpop.trf.xlu0
  %v1375 = vpop.trf.xlu0
  %v1376 = vpop.trf.xlu0
  %v1377 = vpop.trf.xlu0
  %v1378 = vpop.trf.xlu0
  %v1379 = vpop.trf.xlu0
  %v1380 = vpop.trf.xlu0
  %v1381 = vpop.trf.xlu0
  %v1382 = vpop.trf.xlu0
  %v1383 = vpop.trf.xlu0
  %v1384 = vpop.trf.xlu0
  %v1385 = vpop.trf.xlu0
  %v1386 = vpop.trf.xlu0
  %v1387 = vpop.trf.xlu0
  %v1388 = vpop.trf.xlu0
  %1390 = vset.pattern.permute.xlu0 0
  %1391 = vperm.xlu0 %1390, %v1373
  %v1392 = vpop.permute.xlu0 %1391
  %1395 = vset.pattern.permute.xlu0 0
  %1396 = vperm.xlu0 %1395, %v1374
  %v1397 = vpop.permute.xlu0 %1396
  %v1399 = vmul.f32 %v1392, %v490
  %v1400 = vmul.f32 %v1397, %v490
  %v1401 = vsel %vm587, %v352, -inf
  %1402 = vmax.xlane.f32.xlu0 %v1401
  %v1403 = vpop.xlane.xlu0 %1402
  %v1404 = vsub.f32 %v352, %v1403
  %v1405 = vmul.f32 %v1404, 1.442695
  %v1406 = vpow.pop %v1405
  %1408 = vrot.lane.b32.xlu0 %v1406, 48
  %v1409 = vpop.permute.xlu0 %1408
  %v1411 = vsel %vm425, %v1409, 0.0
  %1412 = vadd.xlane.f32.xlu0 %v1411
  %v1413 = vpop.xlane.xlu0 %1412
  %v1414 = vrcp.pop %v1413
  %v1415 = vmul.f32 %v1413, %v1414
  %v1416 = vsub.f32 1.0, %v1415
  %v1417 = vmul.f32 %v1414, %v1416
  %v1418 = vadd.f32 %v1414, %v1417
  %vm1419 = vweird.f32 %v1413
  %vm1420 = vweird.f32 %v1414
  %vm1421 = vmor %vm1419, %vm1420
  %v1422 = vsel %vm1421, %v1414, %v1418
  %v1423 = vand.u32 2147483647, %v1413
  %vm1424 = vcmp.eq.f32.partialorder %v1423, 8.507059e+37
  %v1425 = vand.u32 %v1413, 2147483648
  %v1426 = vor.u32 1.1754944e-38, %v1425
  %v1427 = vsel %vm1424, %v1426, %v1422
  %v1428 = vmul.f32 %v1406, %v1427
  %1430 = vrot.lane.b32.xlu0 %v1428, 48
  %v1431 = vpop.permute.xlu0 %1430
  %1433 = vxpose.xlu0.b32.start [1/16] %v1431, 128
  %1434 = vxpose.xlu0.b32.cont [2/16] 0.0, 128
  %1435 = vxpose.xlu0.b32.cont [3/16] 0.0, 128
  %1436 = vxpose.xlu0.b32.cont [4/16] 0.0, 128
  %1437 = vxpose.xlu0.b32.cont [5/16] 0.0, 128
  %1438 = vxpose.xlu0.b32.cont [6/16] 0.0, 128
  %1439 = vxpose.xlu0.b32.cont [7/16] 0.0, 128
  %1440 = vxpose.xlu0.b32.cont [8/16] 0.0, 128
  %1441 = vxpose.xlu0.b32.cont [9/16] 0.0, 128
  %1442 = vxpose.xlu0.b32.cont [10/16] 0.0, 128
  %1443 = vxpose.xlu0.b32.cont [11/16] 0.0, 128
  %1444 = vxpose.xlu0.b32.cont [12/16] 0.0, 128
  %1445 = vxpose.xlu0.b32.cont [13/16] 0.0, 128
  %1446 = vxpose.xlu0.b32.cont [14/16] 0.0, 128
  %1447 = vxpose.xlu0.b32.cont [15/16] 0.0, 128
  %1448 = vxpose.xlu0.b32.end [16/16] 0.0, 128
  %v1449 = vpop.trf.xlu0
  %v1450 = vpop.trf.xlu0
  %v1451 = vpop.trf.xlu0
  %v1452 = vpop.trf.xlu0
  %v1453 = vpop.trf.xlu0
  %v1454 = vpop.trf.xlu0
  %v1455 = vpop.trf.xlu0
  %v1456 = vpop.trf.xlu0
  %v1457 = vpop.trf.xlu0
  %v1458 = vpop.trf.xlu0
  %v1459 = vpop.trf.xlu0
  %v1460 = vpop.trf.xlu0
  %v1461 = vpop.trf.xlu0
  %v1462 = vpop.trf.xlu0
  %v1463 = vpop.trf.xlu0
  %v1464 = vpop.trf.xlu0
  %1466 = vset.pattern.permute.xlu0 0
  %1467 = vperm.xlu0 %1466, %v1449
  %v1468 = vpop.permute.xlu0 %1467
  %1471 = vset.pattern.permute.xlu0 0
  %1472 = vperm.xlu0 %1471, %v1450
  %v1473 = vpop.permute.xlu0 %1472
  %v1475 = vmul.f32 %v1468, %v559
  %v1476 = vmul.f32 %v1473, %v559
  %s1477 = scalar_lea.vmem %s6, 80
  %v1478 = vld [vmem:[%s1477] sm:$0xff]
  %v1479 = vld [vmem:[%s1477 + $0x8] sm:$0xff]
  %1482 = vrot.lane.b32.xlu0 %v1399, 88
  %v1483 = vpop.permute.xlu0 %1482
  %1484 = vrot.lane.b32.xlu0 %v1400, 88
  %v1485 = vpop.permute.xlu0 %1484
  %v1488 = vmul.f32 %v1478, %v1483
  %v1489 = vmul.f32 %v1479, %v1485
  %1492 = vrot.lane.b32.xlu0 %v1475, 24
  %v1493 = vpop.permute.xlu0 %1492
  %1494 = vrot.lane.b32.xlu0 %v1476, 24
  %v1495 = vpop.permute.xlu0 %1494
  %v1498 = vadd.f32 %v1488, %v1493
  %v1499 = vadd.f32 %v1489, %v1495
  %1500 = vrot.lane.b32.xlu0 %v563, 123
  %v1501 = vpop.permute.xlu0 %1500
  %s1502 = vtos %v1501
  %v1503 = vstv %s1502
  %v1505 = vmul.f32 %v1503, %v1498
  %v1506 = vmul.f32 %v1503, %v1499
  %s1507 = scalar_lea.vmem %s7, 80
  %1508 = vst.msk [vmem:[%s1507] sm:$0xff] %vm584, %v1505
  %1509 = vst.msk [vmem:[%s1507 + $0x8] sm:$0xff] %vm584, %v1506
  %v1510 = vsel %vm851, %v312, -inf
  %1511 = vmax.xlane.f32.xlu0 %v1510
  %v1512 = vpop.xlane.xlu0 %1511
  %v1513 = vsub.f32 %v312, %v1512
  %v1514 = vmul.f32 %v1513, 1.442695
  %v1515 = vpow.pop %v1514
  %1517 = vrot.lane.b32.xlu0 %v1515, 96
  %v1518 = vpop.permute.xlu0 %1517
  %v1520 = vsel %vm425, %v1518, 0.0
  %1521 = vadd.xlane.f32.xlu0 %v1520
  %v1522 = vpop.xlane.xlu0 %1521
  %v1523 = vrcp.pop %v1522
  %v1524 = vmul.f32 %v1522, %v1523
  %v1525 = vsub.f32 1.0, %v1524
  %v1526 = vmul.f32 %v1523, %v1525
  %v1527 = vadd.f32 %v1523, %v1526
  %vm1528 = vweird.f32 %v1522
  %vm1529 = vweird.f32 %v1523
  %vm1530 = vmor %vm1528, %vm1529
  %v1531 = vsel %vm1530, %v1523, %v1527
  %v1532 = vand.u32 2147483647, %v1522
  %vm1533 = vcmp.eq.f32.partialorder %v1532, 8.507059e+37
  %v1534 = vand.u32 %v1522, 2147483648
  %v1535 = vor.u32 1.1754944e-38, %v1534
  %v1536 = vsel %vm1533, %v1535, %v1531
  %v1537 = vmul.f32 %v1515, %v1536
  %1539 = vrot.lane.b32.xlu0 %v1537, 96
  %v1540 = vpop.permute.xlu0 %1539
  %1542 = vxpose.xlu0.b32.start [1/16] %v1540, 128
  %1543 = vxpose.xlu0.b32.cont [2/16] 0.0, 128
  %1544 = vxpose.xlu0.b32.cont [3/16] 0.0, 128
  %1545 = vxpose.xlu0.b32.cont [4/16] 0.0, 128
  %1546 = vxpose.xlu0.b32.cont [5/16] 0.0, 128
  %1547 = vxpose.xlu0.b32.cont [6/16] 0.0, 128
  %1548 = vxpose.xlu0.b32.cont [7/16] 0.0, 128
  %1549 = vxpose.xlu0.b32.cont [8/16] 0.0, 128
  %1550 = vxpose.xlu0.b32.cont [9/16] 0.0, 128
  %1551 = vxpose.xlu0.b32.cont [10/16] 0.0, 128
  %1552 = vxpose.xlu0.b32.cont [11/16] 0.0, 128
  %1553 = vxpose.xlu0.b32.cont [12/16] 0.0, 128
  %1554 = vxpose.xlu0.b32.cont [13/16] 0.0, 128
  %1555 = vxpose.xlu0.b32.cont [14/16] 0.0, 128
  %1556 = vxpose.xlu0.b32.cont [15/16] 0.0, 128
  %1557 = vxpose.xlu0.b32.end [16/16] 0.0, 128
  %v1558 = vpop.trf.xlu0
  %v1559 = vpop.trf.xlu0
  %v1560 = vpop.trf.xlu0
  %v1561 = vpop.trf.xlu0
  %v1562 = vpop.trf.xlu0
  %v1563 = vpop.trf.xlu0
  %v1564 = vpop.trf.xlu0
  %v1565 = vpop.trf.xlu0
  %v1566 = vpop.trf.xlu0
  %v1567 = vpop.trf.xlu0
  %v1568 = vpop.trf.xlu0
  %v1569 = vpop.trf.xlu0
  %v1570 = vpop.trf.xlu0
  %v1571 = vpop.trf.xlu0
  %v1572 = vpop.trf.xlu0
  %v1573 = vpop.trf.xlu0
  %1575 = vset.pattern.permute.xlu0 0
  %1576 = vperm.xlu0 %1575, %v1558
  %v1577 = vpop.permute.xlu0 %1576
  %1580 = vset.pattern.permute.xlu0 0
  %1581 = vperm.xlu0 %1580, %v1559
  %v1582 = vpop.permute.xlu0 %1581
  %v1584 = vmul.f32 %v1577, %v490
  %v1585 = vmul.f32 %v1582, %v490
  %v1586 = vsel %vm774, %v352, -inf
  %1587 = vmax.xlane.f32.xlu0 %v1586
  %v1588 = vpop.xlane.xlu0 %1587
  %v1589 = vsub.f32 %v352, %v1588
  %v1590 = vmul.f32 %v1589, 1.442695
  %v1591 = vpow.pop %v1590
  %1593 = vrot.lane.b32.xlu0 %v1591, 32
  %v1594 = vpop.permute.xlu0 %1593
  %v1596 = vsel %vm425, %v1594, 0.0
  %1597 = vadd.xlane.f32.xlu0 %v1596
  %v1598 = vpop.xlane.xlu0 %1597
  %v1599 = vrcp.pop %v1598
  %v1600 = vmul.f32 %v1598, %v1599
  %v1601 = vsub.f32 1.0, %v1600
  %v1602 = vmul.f32 %v1599, %v1601
  %v1603 = vadd.f32 %v1599, %v1602
  %vm1604 = vweird.f32 %v1598
  %vm1605 = vweird.f32 %v1599
  %vm1606 = vmor %vm1604, %vm1605
  %v1607 = vsel %vm1606, %v1599, %v1603
  %v1608 = vand.u32 2147483647, %v1598
  %vm1609 = vcmp.eq.f32.partialorder %v1608, 8.507059e+37
  %v1610 = vand.u32 %v1598, 2147483648
  %v1611 = vor.u32 1.1754944e-38, %v1610
  %v1612 = vsel %vm1609, %v1611, %v1607
  %v1613 = vmul.f32 %v1591, %v1612
  %1615 = vrot.lane.b32.xlu0 %v1613, 32
  %v1616 = vpop.permute.xlu0 %1615
  %1618 = vxpose.xlu0.b32.start [1/16] %v1616, 128
  %1619 = vxpose.xlu0.b32.cont [2/16] 0.0, 128
  %1620 = vxpose.xlu0.b32.cont [3/16] 0.0, 128
  %1621 = vxpose.xlu0.b32.cont [4/16] 0.0, 128
  %1622 = vxpose.xlu0.b32.cont [5/16] 0.0, 128
  %1623 = vxpose.xlu0.b32.cont [6/16] 0.0, 128
  %1624 = vxpose.xlu0.b32.cont [7/16] 0.0, 128
  %1625 = vxpose.xlu0.b32.cont [8/16] 0.0, 128
  %1626 = vxpose.xlu0.b32.cont [9/16] 0.0, 128
  %1627 = vxpose.xlu0.b32.cont [10/16] 0.0, 128
  %1628 = vxpose.xlu0.b32.cont [11/16] 0.0, 128
  %1629 = vxpose.xlu0.b32.cont [12/16] 0.0, 128
  %1630 = vxpose.xlu0.b32.cont [13/16] 0.0, 128
  %1631 = vxpose.xlu0.b32.cont [14/16] 0.0, 128
  %1632 = vxpose.xlu0.b32.cont [15/16] 0.0, 128
  %1633 = vxpose.xlu0.b32.end [16/16] 0.0, 128
  %v1634 = vpop.trf.xlu0
  %v1635 = vpop.trf.xlu0
  %v1636 = vpop.trf.xlu0
  %v1637 = vpop.trf.xlu0
  %v1638 = vpop.trf.xlu0
  %v1639 = vpop.trf.xlu0
  %v1640 = vpop.trf.xlu0
  %v1641 = vpop.trf.xlu0
  %v1642 = vpop.trf.xlu0
  %v1643 = vpop.trf.xlu0
  %v1644 = vpop.trf.xlu0
  %v1645 = vpop.trf.xlu0
  %v1646 = vpop.trf.xlu0
  %v1647 = vpop.trf.xlu0
  %v1648 = vpop.trf.xlu0
  %v1649 = vpop.trf.xlu0
  %1651 = vset.pattern.permute.xlu0 0
  %1652 = vperm.xlu0 %1651, %v1634
  %v1653 = vpop.permute.xlu0 %1652
  %1656 = vset.pattern.permute.xlu0 0
  %1657 = vperm.xlu0 %1656, %v1635
  %v1658 = vpop.permute.xlu0 %1657
  %v1660 = vmul.f32 %v1653, %v559
  %v1661 = vmul.f32 %v1658, %v559
  %s1662 = scalar_lea.vmem %s6, 96
  %v1663 = vld [vmem:[%s1662] sm:$0xff]
  %v1664 = vld [vmem:[%s1662 + $0x8] sm:$0xff]
  %1667 = vrot.lane.b32.xlu0 %v1584, 80
  %v1668 = vpop.permute.xlu0 %1667
  %1669 = vrot.lane.b32.xlu0 %v1585, 80
  %v1670 = vpop.permute.xlu0 %1669
  %v1673 = vmul.f32 %v1663, %v1668
  %v1674 = vmul.f32 %v1664, %v1670
  %1677 = vrot.lane.b32.xlu0 %v1660, 16
  %v1678 = vpop.permute.xlu0 %1677
  %1679 = vrot.lane.b32.xlu0 %v1661, 16
  %v1680 = vpop.permute.xlu0 %1679
  %v1683 = vadd.f32 %v1673, %v1678
  %v1684 = vadd.f32 %v1674, %v1680
  %1685 = vrot.lane.b32.xlu0 %v563, 122
  %v1686 = vpop.permute.xlu0 %1685
  %s1687 = vtos %v1686
  %v1688 = vstv %s1687
  %v1690 = vmul.f32 %v1688, %v1683
  %v1691 = vmul.f32 %v1688, %v1684
  %s1692 = scalar_lea.vmem %s7, 96
  %1693 = vst.msk [vmem:[%s1692] sm:$0xff] %vm584, %v1690
  %1694 = vst.msk [vmem:[%s1692 + $0x8] sm:$0xff] %vm584, %v1691
  %v1695 = vsel %vm1038, %v312, -inf
  %1696 = vmax.xlane.f32.xlu0 %v1695
  %v1697 = vpop.xlane.xlu0 %1696
  %v1698 = vsub.f32 %v312, %v1697
  %v1699 = vmul.f32 %v1698, 1.442695
  %v1700 = vpow.pop %v1699
  %1702 = vrot.lane.b32.xlu0 %v1700, 80
  %v1703 = vpop.permute.xlu0 %1702
  %v1705 = vsel %vm425, %v1703, 0.0
  %1706 = vadd.xlane.f32.xlu0 %v1705
  %v1707 = vpop.xlane.xlu0 %1706
  %v1708 = vrcp.pop %v1707
  %v1709 = vmul.f32 %v1707, %v1708
  %v1710 = vsub.f32 1.0, %v1709
  %v1711 = vmul.f32 %v1708, %v1710
  %v1712 = vadd.f32 %v1708, %v1711
  %vm1713 = vweird.f32 %v1707
  %vm1714 = vweird.f32 %v1708
  %vm1715 = vmor %vm1713, %vm1714
  %v1716 = vsel %vm1715, %v1708, %v1712
  %v1717 = vand.u32 2147483647, %v1707
  %vm1718 = vcmp.eq.f32.partialorder %v1717, 8.507059e+37
  %v1719 = vand.u32 %v1707, 2147483648
  %v1720 = vor.u32 1.1754944e-38, %v1719
  %v1721 = vsel %vm1718, %v1720, %v1716
  %v1722 = vmul.f32 %v1700, %v1721
  %1724 = vrot.lane.b32.xlu0 %v1722, 80
  %v1725 = vpop.permute.xlu0 %1724
  %1727 = vxpose.xlu0.b32.start [1/16] %v1725, 128
  %1728 = vxpose.xlu0.b32.cont [2/16] 0.0, 128
  %1729 = vxpose.xlu0.b32.cont [3/16] 0.0, 128
  %1730 = vxpose.xlu0.b32.cont [4/16] 0.0, 128
  %1731 = vxpose.xlu0.b32.cont [5/16] 0.0, 128
  %1732 = vxpose.xlu0.b32.cont [6/16] 0.0, 128
  %1733 = vxpose.xlu0.b32.cont [7/16] 0.0, 128
  %1734 = vxpose.xlu0.b32.cont [8/16] 0.0, 128
  %1735 = vxpose.xlu0.b32.cont [9/16] 0.0, 128
  %1736 = vxpose.xlu0.b32.cont [10/16] 0.0, 128
  %1737 = vxpose.xlu0.b32.cont [11/16] 0.0, 128
  %1738 = vxpose.xlu0.b32.cont [12/16] 0.0, 128
  %1739 = vxpose.xlu0.b32.cont [13/16] 0.0, 128
  %1740 = vxpose.xlu0.b32.cont [14/16] 0.0, 128
  %1741 = vxpose.xlu0.b32.cont [15/16] 0.0, 128
  %1742 = vxpose.xlu0.b32.end [16/16] 0.0, 128
  %v1743 = vpop.trf.xlu0
  %v1744 = vpop.trf.xlu0
  %v1745 = vpop.trf.xlu0
  %v1746 = vpop.trf.xlu0
  %v1747 = vpop.trf.xlu0
  %v1748 = vpop.trf.xlu0
  %v1749 = vpop.trf.xlu0
  %v1750 = vpop.trf.xlu0
  %v1751 = vpop.trf.xlu0
  %v1752 = vpop.trf.xlu0
  %v1753 = vpop.trf.xlu0
  %v1754 = vpop.trf.xlu0
  %v1755 = vpop.trf.xlu0
  %v1756 = vpop.trf.xlu0
  %v1757 = vpop.trf.xlu0
  %v1758 = vpop.trf.xlu0
  %1760 = vset.pattern.permute.xlu0 0
  %1761 = vperm.xlu0 %1760, %v1743
  %v1762 = vpop.permute.xlu0 %1761
  %1765 = vset.pattern.permute.xlu0 0
  %1766 = vperm.xlu0 %1765, %v1744
  %v1767 = vpop.permute.xlu0 %1766
  %v1769 = vmul.f32 %v1762, %v490
  %v1770 = vmul.f32 %v1767, %v490
  %v1771 = vsel %vm961, %v352, -inf
  %1772 = vmax.xlane.f32.xlu0 %v1771
  %v1773 = vpop.xlane.xlu0 %1772
  %v1774 = vsub.f32 %v352, %v1773
  %v1775 = vmul.f32 %v1774, 1.442695
  %v1776 = vpow.pop %v1775
  %1778 = vrot.lane.b32.xlu0 %v1776, 16
  %v1779 = vpop.permute.xlu0 %1778
  %v1781 = vsel %vm425, %v1779, 0.0
  %1782 = vadd.xlane.f32.xlu0 %v1781
  %v1783 = vpop.xlane.xlu0 %1782
  %v1784 = vrcp.pop %v1783
  %v1785 = vmul.f32 %v1783, %v1784
  %v1786 = vsub.f32 1.0, %v1785
  %v1787 = vmul.f32 %v1784, %v1786
  %v1788 = vadd.f32 %v1784, %v1787
  %vm1789 = vweird.f32 %v1783
  %vm1790 = vweird.f32 %v1784
  %vm1791 = vmor %vm1789, %vm1790
  %v1792 = vsel %vm1791, %v1784, %v1788
  %v1793 = vand.u32 2147483647, %v1783
  %vm1794 = vcmp.eq.f32.partialorder %v1793, 8.507059e+37
  %v1795 = vand.u32 %v1783, 2147483648
  %v1796 = vor.u32 1.1754944e-38, %v1795
  %v1797 = vsel %vm1794, %v1796, %v1792
  %v1798 = vmul.f32 %v1776, %v1797
  %1800 = vrot.lane.b32.xlu0 %v1798, 16
  %v1801 = vpop.permute.xlu0 %1800
  %1803 = vxpose.xlu0.b32.start [1/16] %v1801, 128
  %1804 = vxpose.xlu0.b32.cont [2/16] 0.0, 128
  %1805 = vxpose.xlu0.b32.cont [3/16] 0.0, 128
  %1806 = vxpose.xlu0.b32.cont [4/16] 0.0, 128
  %1807 = vxpose.xlu0.b32.cont [5/16] 0.0, 128
  %1808 = vxpose.xlu0.b32.cont [6/16] 0.0, 128
  %1809 = vxpose.xlu0.b32.cont [7/16] 0.0, 128
  %1810 = vxpose.xlu0.b32.cont [8/16] 0.0, 128
  %1811 = vxpose.xlu0.b32.cont [9/16] 0.0, 128
  %1812 = vxpose.xlu0.b32.cont [10/16] 0.0, 128
  %1813 = vxpose.xlu0.b32.cont [11/16] 0.0, 128
  %1814 = vxpose.xlu0.b32.cont [12/16] 0.0, 128
  %1815 = vxpose.xlu0.b32.cont [13/16] 0.0, 128
  %1816 = vxpose.xlu0.b32.cont [14/16] 0.0, 128
  %1817 = vxpose.xlu0.b32.cont [15/16] 0.0, 128
  %1818 = vxpose.xlu0.b32.end [16/16] 0.0, 128
  %v1819 = vpop.trf.xlu0
  %v1820 = vpop.trf.xlu0
  %v1821 = vpop.trf.xlu0
  %v1822 = vpop.trf.xlu0
  %v1823 = vpop.trf.xlu0
  %v1824 = vpop.trf.xlu0
  %v1825 = vpop.trf.xlu0
  %v1826 = vpop.trf.xlu0
  %v1827 = vpop.trf.xlu0
  %v1828 = vpop.trf.xlu0
  %v1829 = vpop.trf.xlu0
  %v1830 = vpop.trf.xlu0
  %v1831 = vpop.trf.xlu0
  %v1832 = vpop.trf.xlu0
  %v1833 = vpop.trf.xlu0
  %v1834 = vpop.trf.xlu0
  %1836 = vset.pattern.permute.xlu0 0
  %1837 = vperm.xlu0 %1836, %v1819
  %v1838 = vpop.permute.xlu0 %1837
  %1841 = vset.pattern.permute.xlu0 0
  %1842 = vperm.xlu0 %1841, %v1820
  %v1843 = vpop.permute.xlu0 %1842
  %v1845 = vmul.f32 %v1838, %v559
  %v1846 = vmul.f32 %v1843, %v559
  %s1847 = scalar_lea.vmem %s6, 112
  %v1848 = vld [vmem:[%s1847] sm:$0xff]
  %v1849 = vld [vmem:[%s1847 + $0x8] sm:$0xff]
  %1852 = vrot.lane.b32.xlu0 %v1769, 72
  %v1853 = vpop.permute.xlu0 %1852
  %1854 = vrot.lane.b32.xlu0 %v1770, 72
  %v1855 = vpop.permute.xlu0 %1854
  %v1858 = vmul.f32 %v1848, %v1853
  %v1859 = vmul.f32 %v1849, %v1855
  %1862 = vrot.lane.b32.xlu0 %v1845, 8
  %v1863 = vpop.permute.xlu0 %1862
  %1864 = vrot.lane.b32.xlu0 %v1846, 8
  %v1865 = vpop.permute.xlu0 %1864
  %v1868 = vadd.f32 %v1858, %v1863
  %v1869 = vadd.f32 %v1859, %v1865
  %1870 = vrot.lane.b32.xlu0 %v563, 121
  %v1871 = vpop.permute.xlu0 %1870
  %s1872 = vtos %v1871
  %v1873 = vstv %s1872
  %v1875 = vmul.f32 %v1873, %v1868
  %v1876 = vmul.f32 %v1873, %v1869
  %s1877 = scalar_lea.vmem %s7, 112
  %1878 = vst.msk [vmem:[%s1877] sm:$0xff] %vm584, %v1875
  %1879 = vst.msk [vmem:[%s1877 + $0x8] sm:$0xff] %vm584, %v1876
  // Predicated region
  $region30: #{tpu_custom_call.1} parent=0 // pred_check
    _
  $region31: #{tpu_custom_call.1} parent=0 // pred_check_branch
    %1881 = sbr.rel (0) target = $region33
  $region32: #{tpu_custom_call.1} parent=0 // pred_region
    _
  $region33: #{tpu_custom_call.1} parent=0 // pred_fallthru
    _
  // Predicated region
  $region34: #{tpu_custom_call.1} parent=0 // pred_check
    _
  $region35: #{tpu_custom_call.1} parent=0 // pred_check_branch
    %1883 = sbr.rel (0) target = $region37
  $region36: #{tpu_custom_call.1} parent=0 // pred_region
    _
  $region37: #{tpu_custom_call.1} parent=0 // pred_fallthru
    _

</llo_original>
